<compile_context>
chip_gen: v7x
topology: tpu7x:2x2x1
jax: 0.10.0
libtpu: 0.0.40
codegen_flags: <defaults>
</compile_context>

<pallas_src>
import numpy as np
import jax
import jax.numpy as jnp
from jax.experimental import pallas as pl
from jax.experimental.pallas import tpu as pltpu

_EPS = 1e-5  # PyTorch GroupNorm default


def _group_norm(x, gamma, beta):
    # GroupNorm(num_groups=1) on (rows, C): normalize each row over all C.
    mean = jnp.mean(x, axis=-1, keepdims=True)
    var = jnp.mean((x - mean) ** 2, axis=-1, keepdims=True)
    return (x - mean) * jax.lax.rsqrt(var + _EPS) * gamma + beta


def m2m_iter_kernel(feat_row_ref, feat_col_ref, adj_ref, w_all_ref, w_ctr2_ref,
                    g1_ref, b1_ref, g2_ref, b2_ref, out_ref, acc_ref):
    f32 = jnp.float32
    r = pl.program_id(0)
    c = pl.program_id(1)
    last_c = pl.num_programs(1) - 1
    C = feat_row_ref.shape[1]
    K = adj_ref.shape[0]

    @pl.when(c == 0)
    def _():
        acc_ref[...] = jnp.zeros_like(acc_ref)

    # Fused projection of this column tile's node features against
    # [W_ctr | W_pre0 | W_suc0 | ...] -> (TILE, (K+1)*C), lane-dense MXU output.
    proj = jnp.dot(feat_col_ref[...], w_all_ref[...], preferred_element_type=f32)

    # The diagonal tile carries the 'ctr' (self) contribution for this row tile.
    @pl.when(c == r)
    def _():
        acc_ref[...] += proj[:, :C]

    # temp += A_k[row_tile, col_tile] @ (feat_col @ W_edge_k)
    for k in range(K):
        acc_ref[...] += jnp.dot(adj_ref[k].astype(f32),
                                proj[:, (k + 1) * C:(k + 2) * C],
                                preferred_element_type=f32)

    # Finalize this row tile once the adjacency-column reduction is complete.
    @pl.when(c == last_c)
    def _():
        x = _group_norm(acc_ref[...], g1_ref[...], b1_ref[...])
        x = jnp.maximum(x, 0.0)
        x = jnp.dot(x, w_ctr2_ref[...], preferred_element_type=f32)
        x = _group_norm(x, g2_ref[...], b2_ref[...])
        x = jnp.maximum(x + feat_row_ref[...], 0.0)  # residual + relu
        out_ref[...] = x


def m2m_forward(feat, graph, params, *, tile=128):
    """Pallas M2M forward.

    feat:   (N, C) lane-node features (output of A2M).
    graph:  dict with 'pre'/'suc' lists of {'u','v'} edge-index arrays.
    params: stacked per-iteration weights, linears stored pre-transposed (in,out).
    """
    assert tile % 128 == 0, "tile must be a multiple of 128 (lane width)"
    N, C = feat.shape
    num_scales = len(graph["pre"])
    K = 2 * num_scales
    n_iters = params["w_ctr"].shape[0]

    n_pad = ((max(N, 1) + tile - 1) // tile) * tile
    n_tiles = n_pad // tile

    # Dense counting adjacency; bf16 keeps the small integer counts exact while
    # halving DMA traffic / VMEM footprint of the dominant operand.
    adj = jnp.zeros((K, n_pad, n_pad), jnp.float32)
    e = 0
    for s in range(num_scales):
        for k1 in ("pre", "suc"):
            u = graph[k1][s]["u"].astype(jnp.int32)
            v = graph[k1][s]["v"].astype(jnp.int32)
            adj = adj.at[e, u, v].add(1.0)
            e += 1
    adj = adj.astype(jnp.bfloat16)

    feat_p = jnp.zeros((n_pad, C), jnp.float32).at[:N].set(feat.astype(jnp.float32))

    # Fuse per-iteration feat-side projections: [W_ctr | W_e0 | ... | W_e{K-1}].
    w_all = jnp.concatenate([params["w_ctr"][:, None], params["w_edge"]], axis=1)
    w_all = jnp.transpose(w_all, (0, 2, 1, 3)).reshape(n_iters, C, (K + 1) * C)
    w_all = w_all.astype(jnp.float32)
    kC = (K + 1) * C

    grid_spec = pltpu.PrefetchScalarGridSpec(
        num_scalar_prefetch=0,
        grid=(n_tiles, n_tiles),
        in_specs=[
            pl.BlockSpec((tile, C), lambda r, c: (r, 0)),           # feat (row tile)
            pl.BlockSpec((tile, C), lambda r, c: (c, 0)),           # feat (col tile)
            # adjacency tile; add pipeline_mode=pl.Buffered(3) here if the
            # adj DMA is still exposed after tiling.
            pl.BlockSpec((K, tile, tile), lambda r, c: (0, r, c)),
            pl.BlockSpec((C, kC), lambda r, c: (0, 0)),             # fused ctr/edge W
            pl.BlockSpec((C, C), lambda r, c: (0, 0)),              # W_ctr2
            pl.BlockSpec((1, C), lambda r, c: (0, 0)),              # GN(norm) gamma
            pl.BlockSpec((1, C), lambda r, c: (0, 0)),              # GN(norm) beta
            pl.BlockSpec((1, C), lambda r, c: (0, 0)),              # GN(ctr2) gamma
            pl.BlockSpec((1, C), lambda r, c: (0, 0)),              # GN(ctr2) beta
        ],
        out_specs=pl.BlockSpec((tile, C), lambda r, c: (r, 0)),
        scratch_shapes=[pltpu.VMEM((tile, C), jnp.float32)],
    )

    call = pl.pallas_call(
        m2m_iter_kernel,
        out_shape=jax.ShapeDtypeStruct((n_pad, C), jnp.float32),
        grid_spec=grid_spec,
        compiler_params=pltpu.CompilerParams(
            # row axis independent -> megacore-parallel on v7x;
            # adjacency-column axis is the reduction -> arbitrary (innermost).
            dimension_semantics=("parallel", "arbitrary"),
            # Tile budget: adj tile K*tile*tile*2B (double-buffered) plus small
            # feat/weight tiles; 32 MiB leaves ample headroom on v5e/v6e/v7x.
            vmem_limit_bytes=32 * 1024 * 1024,
        ),
    )

    # 4 chained calls: each re-streams adjacency tiles with pipelining and uses
    # the previous iteration's (fully materialized) features as input.
    for i in range(n_iters):
        feat_p = call(
            feat_p, feat_p, adj,
            w_all[i], params["w_ctr2"][i].astype(jnp.float32),
            params["g_norm"][i:i + 1], params["be_norm"][i:i + 1],
            params["g_ctr2"][i:i + 1], params["be_ctr2"][i:i + 1],
        )
    return feat_p[:N]


# --------------------------- pure-JAX reference ------------------------------
def m2m_reference(feat, graph, params):
    def gn(x, g, b):
        m = jnp.mean(x, -1, keepdims=True)
        v = jnp.mean((x - m) ** 2, -1, keepdims=True)
        return (x - m) / jnp.sqrt(v + _EPS) * g + b

    feat = feat.astype(jnp.float32)
    res = feat
    num_scales = len(graph["pre"])
    for i in range(params["w_ctr"].shape[0]):
        temp = feat @ params["w_ctr"][i]
        e = 0
        for s in range(num_scales):
            for k1 in ("pre", "suc"):
                u = graph[k1][s]["u"]
                v = graph[k1][s]["v"]
                temp = temp.at[u].add(feat[v] @ params["w_edge"][i, e])
                e += 1
        x = jnp.maximum(gn(temp, params["g_norm"][i:i + 1],
                           params["be_norm"][i:i + 1]), 0.0)
        x = gn(x @ params["w_ctr2"][i], params["g_ctr2"][i:i + 1],
               params["be_ctr2"][i:i + 1])
        feat = jnp.maximum(x + res, 0.0)
        res = feat
    return feat


# --------------------------------- main --------------------------------------
if __name__ == "__main__":
    num_scales = 2
    C = 32          # n_map
    N = 192         # lane nodes (pads to 256 -> 2x2 grid of 128-wide tiles)
    n_iters = 4     # fixed in M2M
    K = 2 * num_scales

    key = jax.random.PRNGKey(0)
    ks = jax.random.split(key, 10)

    def rnd(k, shape, scale=0.1):
        return (scale * jax.random.normal(k, shape)).astype(jnp.float32)

    params = {
        "w_ctr": rnd(ks[0], (n_iters, C, C)),
        "w_edge": rnd(ks[1], (n_iters, K, C, C)),
        "g_norm": (1.0 + 0.1 * jax.random.normal(ks[2], (n_iters, C))).astype(jnp.float32),
        "be_norm": rnd(ks[3], (n_iters, C)),
        "w_ctr2": rnd(ks[4], (n_iters, C, C)),
        "g_ctr2": (1.0 + 0.1 * jax.random.normal(ks[5], (n_iters, C))).astype(jnp.float32),
        "be_ctr2": rnd(ks[6], (n_iters, C)),
    }

    feat = rnd(ks[7], (N, C), 1.0)

    # Synthetic lane graph: a chain; pre_k / suc_k connect each node to its
    # (k+1)-hop predecessor / successor (the structure LaneGCN dilates over).
    graph = {"pre": [], "suc": []}
    for s in range(num_scales):
        hop = s + 1
        graph["pre"].append({"u": jnp.arange(hop, N, dtype=jnp.int32),
                             "v": jnp.arange(0, N - hop, dtype=jnp.int32)})
        graph["suc"].append({"u": jnp.arange(0, N - hop, dtype=jnp.int32),
                             "v": jnp.arange(hop, N, dtype=jnp.int32)})

    out = jax.block_until_ready(m2m_forward(feat, graph, params))
    ref = jax.block_until_ready(m2m_reference(feat, graph, params))
    np.testing.assert_allclose(np.asarray(out), np.asarray(ref),
                               rtol=1e-3, atol=1e-3)
    print("KERNEL_OK")
</pallas_src>

<mosaic_0001>
module attributes {stable_mosaic.version = 11 : i64} {
  func.func @m2m_iter_kernel(%arg0: i32, %arg1: i32, %arg2: memref<128x32xf32, #tpu.memory_space<vmem>>, %arg3: memref<128x32xf32, #tpu.memory_space<vmem>>, %arg4: memref<4x128x128xbf16, #tpu.memory_space<vmem>>, %arg5: memref<32x160xf32, #tpu.memory_space<vmem>>, %arg6: memref<32x32xf32, #tpu.memory_space<vmem>>, %arg7: memref<1x32xf32, #tpu.memory_space<vmem>>, %arg8: memref<1x32xf32, #tpu.memory_space<vmem>>, %arg9: memref<1x32xf32, #tpu.memory_space<vmem>>, %arg10: memref<1x32xf32, #tpu.memory_space<vmem>>, %arg11: memref<128x32xf32, #tpu.memory_space<vmem>>, %arg12: memref<128x32xf32, #tpu.memory_space<vmem>>) attributes {dimension_semantics = [#tpu.dimension_semantics<parallel>, #tpu.dimension_semantics<arbitrary>], iteration_bounds = array<i64: 2, 2>, scalar_prefetch = 0 : i64, scratch_operands = 1 : i64, tpu.core_type = #tpu.core_type<tc>, window_params = [{transform_indices = @transform_0, window_bounds = array<i64: 128, 32>}, {transform_indices = @transform_1, window_bounds = array<i64: 128, 32>}, {transform_indices = @transform_2, window_bounds = array<i64: 4, 128, 128>}, {pipeline_mode = #tpu.pipeline_mode<synchronous>, transform_indices = @transform_3, window_bounds = array<i64: 32, 160>}, {pipeline_mode = #tpu.pipeline_mode<synchronous>, transform_indices = @transform_4, window_bounds = array<i64: 32, 32>}, {pipeline_mode = #tpu.pipeline_mode<synchronous>, transform_indices = @transform_5, window_bounds = array<i64: 1, 32>}, {pipeline_mode = #tpu.pipeline_mode<synchronous>, transform_indices = @transform_6, window_bounds = array<i64: 1, 32>}, {pipeline_mode = #tpu.pipeline_mode<synchronous>, transform_indices = @transform_7, window_bounds = array<i64: 1, 32>}, {pipeline_mode = #tpu.pipeline_mode<synchronous>, transform_indices = @transform_8, window_bounds = array<i64: 1, 32>}, {transform_indices = @transform_9, window_bounds = array<i64: 128, 32>}]} {
    %c0_i32 = arith.constant 0 : i32
    %0 = arith.cmpi eq, %arg1, %c0_i32 : i32
    %1 = arith.extui %0 : i1 to i32
    %c0_i32_0 = arith.constant 0 : i32
    %2 = arith.cmpi ne, %1, %c0_i32_0 : i32
    scf.if %2 {
      %cst_35 = arith.constant 0.000000e+00 : f32
      %44 = vector.broadcast %cst_35 : f32 to vector<128x32xf32>
      %c0_36 = arith.constant 0 : index
      %c0_37 = arith.constant 0 : index
      %45 = vector.load %arg12[%c0_36, %c0_37] : memref<128x32xf32, #tpu.memory_space<vmem>>, vector<128x32xf32>
      tpu.vector_store %arg12[%c0_36, %c0_37], %44 {strides = array<i32>} : memref<128x32xf32, #tpu.memory_space<vmem>>, vector<128x32xf32>,
    } else {
    }
    %c0 = arith.constant 0 : index
    %c0_1 = arith.constant 0 : index
    %3 = vector.load %arg3[%c0, %c0_1] : memref<128x32xf32, #tpu.memory_space<vmem>>, vector<128x32xf32>
    %c0_2 = arith.constant 0 : index
    %c0_3 = arith.constant 0 : index
    %4 = vector.load %arg5[%c0_2, %c0_3] : memref<32x160xf32, #tpu.memory_space<vmem>>, vector<32x160xf32>
    %cst = arith.constant dense<0.000000e+00> : vector<128x160xf32>
    %5 = tpu.matmul %3, %4, %cst {dimension_numbers = #tpu.dot_dimension_numbers<[1], [0], [0], [1], [0, 0, 1, 1], [], []>} : vector<128x32xf32>, vector<32x160xf32>, vector<128x160xf32> -> vector<128x160xf32>
    %6 = arith.cmpi eq, %arg1, %arg0 : i32
    %7 = arith.extui %6 : i1 to i32
    %c0_i32_4 = arith.constant 0 : i32
    %8 = arith.cmpi ne, %7, %c0_i32_4 : i32
    scf.if %8 {
      %c0_35 = arith.constant 0 : index
      %c0_36 = arith.constant 0 : index
      %44 = vector.load %arg12[%c0_35, %c0_36] : memref<128x32xf32, #tpu.memory_space<vmem>>, vector<128x32xf32>
      %45 = vector.extract_strided_slice %5 {offsets = [0, 0], sizes = [128, 32], strides = [1, 1]} : vector<128x160xf32> to vector<128x32xf32>
      %46 = arith.addf %44, %45 : vector<128x32xf32>
      %c0_37 = arith.constant 0 : index
      %c0_38 = arith.constant 0 : index
      %47 = vector.load %arg12[%c0_37, %c0_38] : memref<128x32xf32, #tpu.memory_space<vmem>>, vector<128x32xf32>
      tpu.vector_store %arg12[%c0_37, %c0_38], %46 {strides = array<i32>} : memref<128x32xf32, #tpu.memory_space<vmem>>, vector<128x32xf32>,
    } else {
    }
    %c0_5 = arith.constant 0 : index
    %c0_6 = arith.constant 0 : index
    %9 = vector.load %arg12[%c0_5, %c0_6] : memref<128x32xf32, #tpu.memory_space<vmem>>, vector<128x32xf32>
    %c0_7 = arith.constant 0 : index
    %c0_8 = arith.constant 0 : index
    %c0_9 = arith.constant 0 : index
    %10 = vector.load %arg4[%c0_7, %c0_8, %c0_9] : memref<4x128x128xbf16, #tpu.memory_space<vmem>>, vector<1x128x128xbf16>
    %11 = vector.shape_cast %10 : vector<1x128x128xbf16> to vector<128x128xbf16>
    %12 = arith.extf %11 : vector<128x128xbf16> to vector<128x128xf32>
    %13 = vector.extract_strided_slice %5 {offsets = [0, 32], sizes = [128, 32], strides = [1, 1]} : vector<128x160xf32> to vector<128x32xf32>
    %cst_10 = arith.constant dense<0.000000e+00> : vector<128x32xf32>
    %14 = tpu.matmul %12, %13, %cst_10 {dimension_numbers = #tpu.dot_dimension_numbers<[1], [0], [0], [1], [0, 0, 1, 1], [], []>} : vector<128x128xf32>, vector<128x32xf32>, vector<128x32xf32> -> vector<128x32xf32>
    %15 = arith.addf %9, %14 : vector<128x32xf32>
    %c0_11 = arith.constant 0 : index
    %c0_12 = arith.constant 0 : index
    %16 = vector.load %arg12[%c0_11, %c0_12] : memref<128x32xf32, #tpu.memory_space<vmem>>, vector<128x32xf32>
    tpu.vector_store %arg12[%c0_11, %c0_12], %15 {strides = array<i32>} : memref<128x32xf32, #tpu.memory_space<vmem>>, vector<128x32xf32>,
    %c0_13 = arith.constant 0 : index
    %c0_14 = arith.constant 0 : index
    %17 = vector.load %arg12[%c0_13, %c0_14] : memref<128x32xf32, #tpu.memory_space<vmem>>, vector<128x32xf32>
    %c1 = arith.constant 1 : index
    %c0_15 = arith.constant 0 : index
    %c0_16 = arith.constant 0 : index
    %18 = vector.load %arg4[%c1, %c0_15, %c0_16] : memref<4x128x128xbf16, #tpu.memory_space<vmem>>, vector<1x128x128xbf16>
    %19 = vector.shape_cast %18 : vector<1x128x128xbf16> to vector<128x128xbf16>
    %20 = arith.extf %19 : vector<128x128xbf16> to vector<128x128xf32>
    %21 = vector.extract_strided_slice %5 {offsets = [0, 64], sizes = [128, 32], strides = [1, 1]} : vector<128x160xf32> to vector<128x32xf32>
    %cst_17 = arith.constant dense<0.000000e+00> : vector<128x32xf32>
    %22 = tpu.matmul %20, %21, %cst_17 {dimension_numbers = #tpu.dot_dimension_numbers<[1], [0], [0], [1], [0, 0, 1, 1], [], []>} : vector<128x128xf32>, vector<128x32xf32>, vector<128x32xf32> -> vector<128x32xf32>
    %23 = arith.addf %17, %22 : vector<128x32xf32>
    %c0_18 = arith.constant 0 : index
    %c0_19 = arith.constant 0 : index
    %24 = vector.load %arg12[%c0_18, %c0_19] : memref<128x32xf32, #tpu.memory_space<vmem>>, vector<128x32xf32>
    tpu.vector_store %arg12[%c0_18, %c0_19], %23 {strides = array<i32>} : memref<128x32xf32, #tpu.memory_space<vmem>>, vector<128x32xf32>,
    %c0_20 = arith.constant 0 : index
    %c0_21 = arith.constant 0 : index
    %25 = vector.load %arg12[%c0_20, %c0_21] : memref<128x32xf32, #tpu.memory_space<vmem>>, vector<128x32xf32>
    %c2 = arith.constant 2 : index
    %c0_22 = arith.constant 0 : index
    %c0_23 = arith.constant 0 : index
    %26 = vector.load %arg4[%c2, %c0_22, %c0_23] : memref<4x128x128xbf16, #tpu.memory_space<vmem>>, vector<1x128x128xbf16>
    %27 = vector.shape_cast %26 : vector<1x128x128xbf16> to vector<128x128xbf16>
    %28 = arith.extf %27 : vector<128x128xbf16> to vector<128x128xf32>
    %29 = vector.extract_strided_slice %5 {offsets = [0, 96], sizes = [128, 32], strides = [1, 1]} : vector<128x160xf32> to vector<128x32xf32>
    %cst_24 = arith.constant dense<0.000000e+00> : vector<128x32xf32>
    %30 = tpu.matmul %28, %29, %cst_24 {dimension_numbers = #tpu.dot_dimension_numbers<[1], [0], [0], [1], [0, 0, 1, 1], [], []>} : vector<128x128xf32>, vector<128x32xf32>, vector<128x32xf32> -> vector<128x32xf32>
    %31 = arith.addf %25, %30 : vector<128x32xf32>
    %c0_25 = arith.constant 0 : index
    %c0_26 = arith.constant 0 : index
    %32 = vector.load %arg12[%c0_25, %c0_26] : memref<128x32xf32, #tpu.memory_space<vmem>>, vector<128x32xf32>
    tpu.vector_store %arg12[%c0_25, %c0_26], %31 {strides = array<i32>} : memref<128x32xf32, #tpu.memory_space<vmem>>, vector<128x32xf32>,
    %c0_27 = arith.constant 0 : index
    %c0_28 = arith.constant 0 : index
    %33 = vector.load %arg12[%c0_27, %c0_28] : memref<128x32xf32, #tpu.memory_space<vmem>>, vector<128x32xf32>
    %c3 = arith.constant 3 : index
    %c0_29 = arith.constant 0 : index
    %c0_30 = arith.constant 0 : index
    %34 = vector.load %arg4[%c3, %c0_29, %c0_30] : memref<4x128x128xbf16, #tpu.memory_space<vmem>>, vector<1x128x128xbf16>
    %35 = vector.shape_cast %34 : vector<1x128x128xbf16> to vector<128x128xbf16>
    %36 = arith.extf %35 : vector<128x128xbf16> to vector<128x128xf32>
    %37 = vector.extract_strided_slice %5 {offsets = [0, 128], sizes = [128, 32], strides = [1, 1]} : vector<128x160xf32> to vector<128x32xf32>
    %cst_31 = arith.constant dense<0.000000e+00> : vector<128x32xf32>
    %38 = tpu.matmul %36, %37, %cst_31 {dimension_numbers = #tpu.dot_dimension_numbers<[1], [0], [0], [1], [0, 0, 1, 1], [], []>} : vector<128x128xf32>, vector<128x32xf32>, vector<128x32xf32> -> vector<128x32xf32>
    %39 = arith.addf %33, %38 : vector<128x32xf32>
    %c0_32 = arith.constant 0 : index
    %c0_33 = arith.constant 0 : index
    %40 = vector.load %arg12[%c0_32, %c0_33] : memref<128x32xf32, #tpu.memory_space<vmem>>, vector<128x32xf32>
    tpu.vector_store %arg12[%c0_32, %c0_33], %39 {strides = array<i32>} : memref<128x32xf32, #tpu.memory_space<vmem>>, vector<128x32xf32>,
    %c1_i32 = arith.constant 1 : i32
    %41 = arith.cmpi eq, %arg1, %c1_i32 : i32
    %42 = arith.extui %41 : i1 to i32
    %c0_i32_34 = arith.constant 0 : i32
    %43 = arith.cmpi ne, %42, %c0_i32_34 : i32
    scf.if %43 {
      %c0_35 = arith.constant 0 : index
      %c0_36 = arith.constant 0 : index
      %44 = vector.load %arg12[%c0_35, %c0_36] : memref<128x32xf32, #tpu.memory_space<vmem>>, vector<128x32xf32>
      %c0_37 = arith.constant 0 : index
      %c0_38 = arith.constant 0 : index
      %45 = vector.load %arg7[%c0_37, %c0_38] : memref<1x32xf32, #tpu.memory_space<vmem>>, vector<1x32xf32>
      %c0_39 = arith.constant 0 : index
      %c0_40 = arith.constant 0 : index
      %46 = vector.load %arg8[%c0_39, %c0_40] : memref<1x32xf32, #tpu.memory_space<vmem>>, vector<1x32xf32>
      %cst_41 = arith.constant dense<0.000000e+00> : vector<128xf32>
      %47 = vector.multi_reduction <add>, %44, %cst_41 [1] : vector<128x32xf32> to vector<128xf32>
      %48 = vector.shape_cast %47 : vector<128xf32> to vector<128x1xf32>
      %cst_42 = arith.constant 3.200000e+01 : f32
      %49 = vector.broadcast %cst_42 : f32 to vector<128x1xf32>
      %50 = arith.divf %48, %49 : vector<128x1xf32>
      %51 = vector.broadcast %50 : vector<128x1xf32> to vector<128x32xf32>
      %52 = arith.subf %44, %51 : vector<128x32xf32>
      %53 = arith.mulf %52, %52 : vector<128x32xf32>
      %cst_43 = arith.constant dense<0.000000e+00> : vector<128xf32>
      %54 = vector.multi_reduction <add>, %53, %cst_43 [1] : vector<128x32xf32> to vector<128xf32>
      %55 = vector.shape_cast %54 : vector<128xf32> to vector<128x1xf32>
      %cst_44 = arith.constant 3.200000e+01 : f32
      %56 = vector.broadcast %cst_44 : f32 to vector<128x1xf32>
      %57 = arith.divf %55, %56 : vector<128x1xf32>
      %58 = vector.broadcast %50 : vector<128x1xf32> to vector<128x32xf32>
      %59 = arith.subf %44, %58 : vector<128x32xf32>
      %cst_45 = arith.constant 9.99999974E-6 : f32
      %60 = vector.broadcast %cst_45 : f32 to vector<128x1xf32>
      %61 = arith.addf %57, %60 : vector<128x1xf32>
      %62 = math.rsqrt %61 : vector<128x1xf32>
      %63 = vector.broadcast %62 : vector<128x1xf32> to vector<128x32xf32>
      %64 = arith.mulf %59, %63 : vector<128x32xf32>
      %65 = vector.broadcast %45 : vector<1x32xf32> to vector<128x32xf32>
      %66 = arith.mulf %64, %65 : vector<128x32xf32>
      %67 = vector.broadcast %46 : vector<1x32xf32> to vector<128x32xf32>
      %68 = arith.addf %66, %67 : vector<128x32xf32>
      %cst_46 = arith.constant 0.000000e+00 : f32
      %69 = vector.broadcast %cst_46 : f32 to vector<128x32xf32>
      %70 = arith.maximumf %68, %69 : vector<128x32xf32>
      %c0_47 = arith.constant 0 : index
      %c0_48 = arith.constant 0 : index
      %71 = vector.load %arg6[%c0_47, %c0_48] : memref<32x32xf32, #tpu.memory_space<vmem>>, vector<32x32xf32>
      %cst_49 = arith.constant dense<0.000000e+00> : vector<128x32xf32>
      %72 = tpu.matmul %70, %71, %cst_49 {dimension_numbers = #tpu.dot_dimension_numbers<[1], [0], [0], [1], [0, 0, 1, 1], [], []>} : vector<128x32xf32>, vector<32x32xf32>, vector<128x32xf32> -> vector<128x32xf32>
      %c0_50 = arith.constant 0 : index
      %c0_51 = arith.constant 0 : index
      %73 = vector.load %arg9[%c0_50, %c0_51] : memref<1x32xf32, #tpu.memory_space<vmem>>, vector<1x32xf32>
      %c0_52 = arith.constant 0 : index
      %c0_53 = arith.constant 0 : index
      %74 = vector.load %arg10[%c0_52, %c0_53] : memref<1x32xf32, #tpu.memory_space<vmem>>, vector<1x32xf32>
      %cst_54 = arith.constant dense<0.000000e+00> : vector<128xf32>
      %75 = vector.multi_reduction <add>, %72, %cst_54 [1] : vector<128x32xf32> to vector<128xf32>
      %76 = vector.shape_cast %75 : vector<128xf32> to vector<128x1xf32>
      %cst_55 = arith.constant 3.200000e+01 : f32
      %77 = vector.broadcast %cst_55 : f32 to vector<128x1xf32>
      %78 = arith.divf %76, %77 : vector<128x1xf32>
      %79 = vector.broadcast %78 : vector<128x1xf32> to vector<128x32xf32>
      %80 = arith.subf %72, %79 : vector<128x32xf32>
      %81 = arith.mulf %80, %80 : vector<128x32xf32>
      %cst_56 = arith.constant dense<0.000000e+00> : vector<128xf32>
      %82 = vector.multi_reduction <add>, %81, %cst_56 [1] : vector<128x32xf32> to vector<128xf32>
      %83 = vector.shape_cast %82 : vector<128xf32> to vector<128x1xf32>
      %cst_57 = arith.constant 3.200000e+01 : f32
      %84 = vector.broadcast %cst_57 : f32 to vector<128x1xf32>
      %85 = arith.divf %83, %84 : vector<128x1xf32>
      %86 = vector.broadcast %78 : vector<128x1xf32> to vector<128x32xf32>
      %87 = arith.subf %72, %86 : vector<128x32xf32>
      %cst_58 = arith.constant 9.99999974E-6 : f32
      %88 = vector.broadcast %cst_58 : f32 to vector<128x1xf32>
      %89 = arith.addf %85, %88 : vector<128x1xf32>
      %90 = math.rsqrt %89 : vector<128x1xf32>
      %91 = vector.broadcast %90 : vector<128x1xf32> to vector<128x32xf32>
      %92 = arith.mulf %87, %91 : vector<128x32xf32>
      %93 = vector.broadcast %73 : vector<1x32xf32> to vector<128x32xf32>
      %94 = arith.mulf %92, %93 : vector<128x32xf32>
      %95 = vector.broadcast %74 : vector<1x32xf32> to vector<128x32xf32>
      %96 = arith.addf %94, %95 : vector<128x32xf32>
      %c0_59 = arith.constant 0 : index
      %c0_60 = arith.constant 0 : index
      %97 = vector.load %arg2[%c0_59, %c0_60] : memref<128x32xf32, #tpu.memory_space<vmem>>, vector<128x32xf32>
      %98 = arith.addf %96, %97 : vector<128x32xf32>
      %cst_61 = arith.constant 0.000000e+00 : f32
      %99 = vector.broadcast %cst_61 : f32 to vector<128x32xf32>
      %100 = arith.maximumf %98, %99 : vector<128x32xf32>
      %c0_62 = arith.constant 0 : index
      %c0_63 = arith.constant 0 : index
      %101 = vector.load %arg11[%c0_62, %c0_63] : memref<128x32xf32, #tpu.memory_space<vmem>>, vector<128x32xf32>
      tpu.vector_store %arg11[%c0_62, %c0_63], %100 {strides = array<i32>} : memref<128x32xf32, #tpu.memory_space<vmem>>, vector<128x32xf32>,
    } else {
    }
    return
  }
  func.func @transform_0(%arg0: i32, %arg1: i32) -> (i32, i32) {
    %c0_i32 = arith.constant 0 : i32
    %c0_i32_0 = arith.constant 0 : i32
    return %arg0, %c0_i32 : i32, i32
  }
  func.func @transform_1(%arg0: i32, %arg1: i32) -> (i32, i32) {
    %c0_i32 = arith.constant 0 : i32
    %c0_i32_0 = arith.constant 0 : i32
    return %arg1, %c0_i32 : i32, i32
  }
  func.func @transform_2(%arg0: i32, %arg1: i32) -> (i32, i32, i32) {
    %c0_i32 = arith.constant 0 : i32
    %c0_i32_0 = arith.constant 0 : i32
    return %c0_i32, %arg0, %arg1 : i32, i32, i32
  }
  func.func @transform_3(%arg0: i32, %arg1: i32) -> (i32, i32) {
    %c0_i32 = arith.constant 0 : i32
    %c0_i32_0 = arith.constant 0 : i32
    %c0_i32_1 = arith.constant 0 : i32
    return %c0_i32, %c0_i32_0 : i32, i32
  }
  func.func @transform_4(%arg0: i32, %arg1: i32) -> (i32, i32) {
    %c0_i32 = arith.constant 0 : i32
    %c0_i32_0 = arith.constant 0 : i32
    %c0_i32_1 = arith.constant 0 : i32
    return %c0_i32, %c0_i32_0 : i32, i32
  }
  func.func @transform_5(%arg0: i32, %arg1: i32) -> (i32, i32) {
    %c0_i32 = arith.constant 0 : i32
    %c0_i32_0 = arith.constant 0 : i32
    %c0_i32_1 = arith.constant 0 : i32
    return %c0_i32, %c0_i32_0 : i32, i32
  }
  func.func @transform_6(%arg0: i32, %arg1: i32) -> (i32, i32) {
    %c0_i32 = arith.constant 0 : i32
    %c0_i32_0 = arith.constant 0 : i32
    %c0_i32_1 = arith.constant 0 : i32
    return %c0_i32, %c0_i32_0 : i32, i32
  }
  func.func @transform_7(%arg0: i32, %arg1: i32) -> (i32, i32) {
    %c0_i32 = arith.constant 0 : i32
    %c0_i32_0 = arith.constant 0 : i32
    %c0_i32_1 = arith.constant 0 : i32
    return %c0_i32, %c0_i32_0 : i32, i32
  }
  func.func @transform_8(%arg0: i32, %arg1: i32) -> (i32, i32) {
    %c0_i32 = arith.constant 0 : i32
    %c0_i32_0 = arith.constant 0 : i32
    %c0_i32_1 = arith.constant 0 : i32
    return %c0_i32, %c0_i32_0 : i32, i32
  }
  func.func @transform_9(%arg0: i32, %arg1: i32) -> (i32, i32) {
    %c0_i32 = arith.constant 0 : i32
    %c0_i32_0 = arith.constant 0 : i32
    return %arg0, %c0_i32 : i32, i32
  }
}

</mosaic_0001>

<llo_original>
// kernel: tpu_custom_call.1
$region0: #{tpu_custom_call.1}
  #allocation0 [shape = 'u32[]', space=smem, size = 0x4, offset = 0x4, fixed_abs, tag = 'smem constant byte address 0x4 - core index']
  #allocation1 [shape = 'u32[144,128]{1,0:T(1,128)}', space=vmem, size = 0x12000, scoped, tag = 'internal scratch']
  #allocation2 [shape = 'f32[128,32]{1,0:T(8,128)}', space=vmem, size = 0x10000, scoped, tag = 'scratch operand']
  #allocation5 [shape = 's32[]', space=sflag, size = 0x4, offset = 0, fixed_abs, tag = 'sflag constant byte address 0x0 - dummy sync flag']
  %s0 = inlined_call_operand.vmem [shape: f32[256,32], index: 0, kind: input, shape index: {}]
  %s1 = inlined_call_operand.vmem [shape: f32[256,32], index: 1, kind: input, shape index: {}]
  %s2 = inlined_call_operand.hbm [shape: bf16[4,256,256], index: 2, kind: input, shape index: {}]
  %s3 = inlined_call_operand.vmem [shape: f32[32,160], index: 3, kind: input, shape index: {}]
  %s4 = inlined_call_operand.vmem [shape: f32[32,32], index: 4, kind: input, shape index: {}]
  %s5 = inlined_call_operand.vmem [shape: f32[1,32], index: 5, kind: input, shape index: {}]
  %s6 = inlined_call_operand.vmem [shape: f32[1,32], index: 6, kind: input, shape index: {}]
  %s7 = inlined_call_operand.vmem [shape: f32[1,32], index: 7, kind: input, shape index: {}]
  %s8 = inlined_call_operand.vmem [shape: f32[1,32], index: 8, kind: input, shape index: {}]
  %s9 = inlined_call_operand.vmem [shape: f32[256,32], index: 9, kind: output, shape index: {}]
  %s10 = sld [smem:[#allocation0]]
  $region85: #{tpu_custom_call.1} parent=0
    _
  %s12 = ssub.s32 1, %s10
  %s13 = scalar_select 0, %s12, %s10
  $region1: #{tpu_custom_call.1} parent=0
    #allocation3 [shape = 'u8[262144]{0}', space=vmem, size = 0x40000, scoped, tag = 'input window, operand 2']
    #allocation4 [shape = 's32[2]{0}', space=sflag, size = 0x8, scoped, tag = 'scoped memory for tpu_custom_call.1']
    %14 = vsyncpa [#allocation4], 0
    %s15 = scalar_lea.sflag [#allocation4], 1
    %16 = vsyncpa %s15, 0
    loop: start=0, step=1, limit=6
    $region2: #{tpu_custom_call.1} parent=1 // loop_pre_header
      _
    $region3: #{tpu_custom_call.1} parent=1 // loop_header
      %s18 = sphi 0, %s22
      %p19 = scmp.ge.s32.totalorder %s18, 6
      %s25 = sphi 0, %s37
      %s26 = sphi 0, %s33
      %s27 = sphi 0, %s25
      %s28 = sphi 0, %s26
      %s29 = sphi 0, %s27
      %s30 = sphi 0, %s28
      %s40 = sphi 0, %s42
      %s43 = sphi 0, %s40
      %s44 = sphi 0, %s43
      %s60 = sphi 0, %s44
      %s66 = sphi 0, %s68
      %s69 = sphi 0, %s66
      %s70 = sphi 0, %s69
      %s86 = sphi 0, %s70
      %s94 = sphi 0, %s96
      %s97 = sphi 0, %s94
      %s98 = sphi 0, %s97
      %s114 = sphi 0, %s98
      %s118 = sphi 0, %s118
      %s120 = sphi 0, %s118
      %s121 = sphi 0, %s120
      %s135 = sphi 0, %s121
      %s139 = sphi 0, %s139
      %s141 = sphi 0, %s139
      %s142 = sphi 0, %s141
      %s156 = sphi 0, %s142
      %s160 = sphi 0, %s160
      %s162 = sphi 0, %s160
      %s163 = sphi 0, %s162
      %s177 = sphi 0, %s163
      %s181 = sphi 0, %s181
      %s183 = sphi 0, %s181
      %s184 = sphi 0, %s183
      %s198 = sphi 0, %s184
      %s202 = sphi 0, %s202
      %s204 = sphi 0, %s202
      %s205 = sphi 0, %s204
      %s219 = sphi 0, %s205
      %s223 = sphi 0, %s223
      %s225 = sphi 0, %s223
      %s226 = sphi 0, %s225
      %s240 = sphi 0, %s226
      %s246 = sphi 0, %s248
      %s249 = sphi 0, %s246
      %s250 = sphi 0, %s249
      %s266 = sphi 0, %s250
    $region4: #{tpu_custom_call.1} parent=1 // loop_header_branch
      %21 = sbr.rel (%p19) target = $region8
    $region5: #{tpu_custom_call.1} parent=1 // loop_body
      %s23 = ssub.s32 %s18, 1
      %s24 = ssub.s32 %s18, 2
      %s31 = sadd.s32 1, %s26
      %p32 = scmp.ge.s32.totalorder %s31, 2
      %s33 = scalar_select %p32, 0, %s31
      %s34 = sadd.s32 1, %s25
      %s35 = scalar_select %p32, %s34, %s25
      %p36 = scmp.ge.s32.totalorder %s35, 2
      %s37 = scalar_select %p36, 0, %s35
      %s38 = ssub.s32 %s25, %s37
      %p39 = scmp.eq.s32.totalorder %s38, 0
      %s41 = sadd.s32 %s40, 1
      %s42 = scalar_select %p39, %s40, %s41
      %p45 = pneg %p39
      %p46 = scmp.eq.s32.totalorder %s18, 3
      %p47 = por %p45, %p46
      %p48 = scmp.ne.s32.totalorder %s40, %s43
      %p49 = scmp.eq.s32.totalorder %s18, 0
      %p50 = por %p48, %p49
      %p51 = scmp.ne.s32.totalorder %s40, %s43
      %p52 = scmp.eq.s32.totalorder %s23, 3
      %p53 = por %p51, %p52
      %p54 = scmp.ne.s32.totalorder %s43, %s44
      %p55 = scmp.eq.s32.totalorder %s23, 0
      %p56 = por %p54, %p55
      %p57 = scmp.ne.s32.totalorder %s43, %s44
      %p58 = scmp.eq.s32.totalorder %s24, 3
      %p59 = por %p57, %p58
      %p61 = scmp.ne.s32.totalorder %s44, %s60
      %p62 = scmp.eq.s32.totalorder %s24, 0
      %p63 = por %p61, %p62
      %s64 = ssub.s32 %s26, %s33
      %p65 = scmp.eq.s32.totalorder %s64, 0
      %s67 = sadd.s32 %s66, 1
      %s68 = scalar_select %p65, %s66, %s67
      %p71 = pneg %p65
      %p72 = scmp.eq.s32.totalorder %s18, 3
      %p73 = por %p71, %p72
      %p74 = scmp.ne.s32.totalorder %s66, %s69
      %p75 = scmp.eq.s32.totalorder %s18, 0
      %p76 = por %p74, %p75
      %p77 = scmp.ne.s32.totalorder %s66, %s69
      %p78 = scmp.eq.s32.totalorder %s23, 3
      %p79 = por %p77, %p78
      %p80 = scmp.ne.s32.totalorder %s69, %s70
      %p81 = scmp.eq.s32.totalorder %s23, 0
      %p82 = por %p80, %p81
      %p83 = scmp.ne.s32.totalorder %s69, %s70
      %p84 = scmp.eq.s32.totalorder %s24, 3
      %p85 = por %p83, %p84
      %p87 = scmp.ne.s32.totalorder %s70, %s86
      %p88 = scmp.eq.s32.totalorder %s24, 0
      %p89 = por %p87, %p88
      %s90 = ssub.s32 %s25, %s37
      %s91 = ssub.s32 %s26, %s33
      %s92 = sor.u32 %s90, %s91
      %p93 = scmp.eq.s32.totalorder %s92, 0
      %s95 = sadd.s32 %s94, 1
      %s96 = scalar_select %p93, %s94, %s95
      %p99 = pneg %p93
      %p100 = scmp.eq.s32.totalorder %s18, 3
      %p101 = por %p99, %p100
      %p102 = scmp.ne.s32.totalorder %s94, %s97
      %p103 = scmp.eq.s32.totalorder %s18, 0
      %p104 = por %p102, %p103
      %p105 = scmp.ne.s32.totalorder %s94, %s97
      %p106 = scmp.eq.s32.totalorder %s23, 3
      %p107 = por %p105, %p106
      %p108 = scmp.ne.s32.totalorder %s97, %s98
      %p109 = scmp.eq.s32.totalorder %s23, 0
      %p110 = por %p108, %p109
      %p111 = scmp.ne.s32.totalorder %s97, %s98
      %p112 = scmp.eq.s32.totalorder %s24, 3
      %p113 = por %p111, %p112
      %p115 = scmp.ne.s32.totalorder %s98, %s114
      %p116 = scmp.eq.s32.totalorder %s24, 0
      %p117 = por %p115, %p116
      %s119 = sadd.s32 %s118, 1
      %p122 = scmp.eq.s32.totalorder %s18, 3
      %p123 = scmp.ne.s32.totalorder %s118, %s120
      %p124 = scmp.eq.s32.totalorder %s18, 0
      %p125 = por %p123, %p124
      %p126 = scmp.ne.s32.totalorder %s118, %s120
      %p127 = scmp.eq.s32.totalorder %s23, 3
      %p128 = por %p126, %p127
      %p129 = scmp.ne.s32.totalorder %s120, %s121
      %p130 = scmp.eq.s32.totalorder %s23, 0
      %p131 = por %p129, %p130
      %p132 = scmp.ne.s32.totalorder %s120, %s121
      %p133 = scmp.eq.s32.totalorder %s24, 3
      %p134 = por %p132, %p133
      %p136 = scmp.ne.s32.totalorder %s121, %s135
      %p137 = scmp.eq.s32.totalorder %s24, 0
      %p138 = por %p136, %p137
      %s140 = sadd.s32 %s139, 1
      %p143 = scmp.eq.s32.totalorder %s18, 3
      %p144 = scmp.ne.s32.totalorder %s139, %s141
      %p145 = scmp.eq.s32.totalorder %s18, 0
      %p146 = por %p144, %p145
      %p147 = scmp.ne.s32.totalorder %s139, %s141
      %p148 = scmp.eq.s32.totalorder %s23, 3
      %p149 = por %p147, %p148
      %p150 = scmp.ne.s32.totalorder %s141, %s142
      %p151 = scmp.eq.s32.totalorder %s23, 0
      %p152 = por %p150, %p151
      %p153 = scmp.ne.s32.totalorder %s141, %s142
      %p154 = scmp.eq.s32.totalorder %s24, 3
      %p155 = por %p153, %p154
      %p157 = scmp.ne.s32.totalorder %s142, %s156
      %p158 = scmp.eq.s32.totalorder %s24, 0
      %p159 = por %p157, %p158
      %s161 = sadd.s32 %s160, 1
      %p164 = scmp.eq.s32.totalorder %s18, 3
      %p165 = scmp.ne.s32.totalorder %s160, %s162
      %p166 = scmp.eq.s32.totalorder %s18, 0
      %p167 = por %p165, %p166
      %p168 = scmp.ne.s32.totalorder %s160, %s162
      %p169 = scmp.eq.s32.totalorder %s23, 3
      %p170 = por %p168, %p169
      %p171 = scmp.ne.s32.totalorder %s162, %s163
      %p172 = scmp.eq.s32.totalorder %s23, 0
      %p173 = por %p171, %p172
      %p174 = scmp.ne.s32.totalorder %s162, %s163
      %p175 = scmp.eq.s32.totalorder %s24, 3
      %p176 = por %p174, %p175
      %p178 = scmp.ne.s32.totalorder %s163, %s177
      %p179 = scmp.eq.s32.totalorder %s24, 0
      %p180 = por %p178, %p179
      %s182 = sadd.s32 %s181, 1
      %p185 = scmp.eq.s32.totalorder %s18, 3
      %p186 = scmp.ne.s32.totalorder %s181, %s183
      %p187 = scmp.eq.s32.totalorder %s18, 0
      %p188 = por %p186, %p187
      %p189 = scmp.ne.s32.totalorder %s181, %s183
      %p190 = scmp.eq.s32.totalorder %s23, 3
      %p191 = por %p189, %p190
      %p192 = scmp.ne.s32.totalorder %s183, %s184
      %p193 = scmp.eq.s32.totalorder %s23, 0
      %p194 = por %p192, %p193
      %p195 = scmp.ne.s32.totalorder %s183, %s184
      %p196 = scmp.eq.s32.totalorder %s24, 3
      %p197 = por %p195, %p196
      %p199 = scmp.ne.s32.totalorder %s184, %s198
      %p200 = scmp.eq.s32.totalorder %s24, 0
      %p201 = por %p199, %p200
      %s203 = sadd.s32 %s202, 1
      %p206 = scmp.eq.s32.totalorder %s18, 3
      %p207 = scmp.ne.s32.totalorder %s202, %s204
      %p208 = scmp.eq.s32.totalorder %s18, 0
      %p209 = por %p207, %p208
      %p210 = scmp.ne.s32.totalorder %s202, %s204
      %p211 = scmp.eq.s32.totalorder %s23, 3
      %p212 = por %p210, %p211
      %p213 = scmp.ne.s32.totalorder %s204, %s205
      %p214 = scmp.eq.s32.totalorder %s23, 0
      %p215 = por %p213, %p214
      %p216 = scmp.ne.s32.totalorder %s204, %s205
      %p217 = scmp.eq.s32.totalorder %s24, 3
      %p218 = por %p216, %p217
      %p220 = scmp.ne.s32.totalorder %s205, %s219
      %p221 = scmp.eq.s32.totalorder %s24, 0
      %p222 = por %p220, %p221
      %s224 = sadd.s32 %s223, 1
      %p227 = scmp.eq.s32.totalorder %s18, 3
      %p228 = scmp.ne.s32.totalorder %s223, %s225
      %p229 = scmp.eq.s32.totalorder %s18, 0
      %p230 = por %p228, %p229
      %p231 = scmp.ne.s32.totalorder %s223, %s225
      %p232 = scmp.eq.s32.totalorder %s23, 3
      %p233 = por %p231, %p232
      %p234 = scmp.ne.s32.totalorder %s225, %s226
      %p235 = scmp.eq.s32.totalorder %s23, 0
      %p236 = por %p234, %p235
      %p237 = scmp.ne.s32.totalorder %s225, %s226
      %p238 = scmp.eq.s32.totalorder %s24, 3
      %p239 = por %p237, %p238
      %p241 = scmp.ne.s32.totalorder %s226, %s240
      %p242 = scmp.eq.s32.totalorder %s24, 0
      %p243 = por %p241, %p242
      %s244 = ssub.s32 %s25, %s37
      %p245 = scmp.eq.s32.totalorder %s244, 0
      %s247 = sadd.s32 %s246, 1
      %s248 = scalar_select %p245, %s246, %s247
      %p251 = pneg %p245
      %p252 = scmp.eq.s32.totalorder %s18, 3
      %p253 = por %p251, %p252
      %p254 = scmp.ne.s32.totalorder %s246, %s249
      %p255 = scmp.eq.s32.totalorder %s18, 0
      %p256 = por %p254, %p255
      %p257 = scmp.ne.s32.totalorder %s246, %s249
      %p258 = scmp.eq.s32.totalorder %s23, 3
      %p259 = por %p257, %p258
      %p260 = scmp.ne.s32.totalorder %s249, %s250
      %p261 = scmp.eq.s32.totalorder %s23, 0
      %p262 = por %p260, %p261
      %p263 = scmp.ne.s32.totalorder %s249, %s250
      %p264 = scmp.eq.s32.totalorder %s24, 3
      %p265 = por %p263, %p264
      %p267 = scmp.ne.s32.totalorder %s250, %s266
      %p268 = scmp.eq.s32.totalorder %s24, 0
      %p269 = por %p267, %p268
      %p270 = scmp.le.s32.totalorder 1, %s18
      %p271 = scmp.lt.s32.totalorder %s18, 5
      %p272 = pnand %p270, %p271
      %p273 = pneg %p272
      // Predicated region
      $region9: #{tpu_custom_call.1} parent=5 // pred_check
        _
      $region10: #{tpu_custom_call.1} parent=5 // pred_check_branch
        %275 = sbr.rel (%p272) target = $region12
      $region11: #{tpu_custom_call.1} parent=5 // pred_region
        %s276 = ssub.s32 %s18, 1
        // Predicated region
        $region13: #{tpu_custom_call.1} parent=11 // pred_check
          %p277 = pneg %p131
        $region14: #{tpu_custom_call.1} parent=11 // pred_check_branch
          %279 = sbr.rel (%p277) target = $region16
        $region15: #{tpu_custom_call.1} parent=11 // pred_region
          _
        $region16: #{tpu_custom_call.1} parent=11 // pred_fallthru
          _
        // Predicated region
        $region17: #{tpu_custom_call.1} parent=11 // pred_check
          %p280 = pneg %p152
        $region18: #{tpu_custom_call.1} parent=11 // pred_check_branch
          %282 = sbr.rel (%p280) target = $region20
        $region19: #{tpu_custom_call.1} parent=11 // pred_region
          _
        $region20: #{tpu_custom_call.1} parent=11 // pred_fallthru
          _
        // Predicated region
        $region21: #{tpu_custom_call.1} parent=11 // pred_check
          %p283 = pneg %p173
        $region22: #{tpu_custom_call.1} parent=11 // pred_check_branch
          %285 = sbr.rel (%p283) target = $region24
        $region23: #{tpu_custom_call.1} parent=11 // pred_region
          _
        $region24: #{tpu_custom_call.1} parent=11 // pred_fallthru
          _
        // Predicated region
        $region25: #{tpu_custom_call.1} parent=11 // pred_check
          %p286 = pneg %p194
        $region26: #{tpu_custom_call.1} parent=11 // pred_check_branch
          %288 = sbr.rel (%p286) target = $region28
        $region27: #{tpu_custom_call.1} parent=11 // pred_region
          _
        $region28: #{tpu_custom_call.1} parent=11 // pred_fallthru
          _
        // Predicated region
        $region29: #{tpu_custom_call.1} parent=11 // pred_check
          %p289 = pneg %p215
        $region30: #{tpu_custom_call.1} parent=11 // pred_check_branch
          %291 = sbr.rel (%p289) target = $region32
        $region31: #{tpu_custom_call.1} parent=11 // pred_region
          _
        $region32: #{tpu_custom_call.1} parent=11 // pred_fallthru
          _
        // Predicated region
        $region33: #{tpu_custom_call.1} parent=11 // pred_check
          %p292 = pneg %p236
        $region34: #{tpu_custom_call.1} parent=11 // pred_check_branch
          %294 = sbr.rel (%p292) target = $region36
        $region35: #{tpu_custom_call.1} parent=11 // pred_region
          _
        $region36: #{tpu_custom_call.1} parent=11 // pred_fallthru
          _
      $region12: #{tpu_custom_call.1} parent=5 // pred_fallthru
        _
      %p295 = scmp.lt.s32.totalorder %s18, 4
      // Predicated region
      $region37: #{tpu_custom_call.1} parent=5 // pred_check
        %p296 = pneg %p295
      $region38: #{tpu_custom_call.1} parent=5 // pred_check_branch
        %298 = sbr.rel (%p296) target = $region40
      $region39: #{tpu_custom_call.1} parent=5 // pred_region
        // Predicated region
        $region41: #{tpu_custom_call.1} parent=39 // pred_check
          %p299 = pneg %p50
        $region42: #{tpu_custom_call.1} parent=39 // pred_check_branch
          %301 = sbr.rel (%p299) target = $region44
        $region43: #{tpu_custom_call.1} parent=39 // pred_region
          %s302 = smul.u32 16, %s25
          %p303 = scmp.lt.s32.totalorder %s302, 31
          %s304 = scalar_select %p303, %s302, 31
          %s305 = smul.addr %s304, 8
          %s306 = scalar_lea.vmem %s0, %s305
          %s307 = smul.u32 16, %s25
        $region44: #{tpu_custom_call.1} parent=39 // pred_fallthru
          _
        // Predicated region
        $region45: #{tpu_custom_call.1} parent=39 // pred_check
          %p308 = pneg %p76
        $region46: #{tpu_custom_call.1} parent=39 // pred_check_branch
          %310 = sbr.rel (%p308) target = $region48
        $region47: #{tpu_custom_call.1} parent=39 // pred_region
          %s311 = smul.u32 16, %s26
          %p312 = scmp.lt.s32.totalorder %s311, 31
          %s313 = scalar_select %p312, %s311, 31
          %s314 = smul.addr %s313, 8
          %s315 = scalar_lea.vmem %s1, %s314
          %s316 = smul.u32 16, %s26
        $region48: #{tpu_custom_call.1} parent=39 // pred_fallthru
          _
        // Predicated region
        $region49: #{tpu_custom_call.1} parent=39 // pred_check
          %p317 = pneg %p104
        $region50: #{tpu_custom_call.1} parent=39 // pred_check_branch
          %319 = sbr.rel (%p317) target = $region52
        $region51: #{tpu_custom_call.1} parent=39 // pred_region
          #allocation6 [shape = 'u32[6]{0}', space=smem, size = 0x18, scoped, tag = 'DMA stride descriptor']
          %s320 = sand.u32 %s94, 1
          %s321 = scalar_lea.sflag [#allocation4], %s320
          %s322 = sand.u32 %s94, 1
          %s323 = smul.addr %s322, 256
          %s324 = scalar_lea.vmem [#allocation3], %s323
          %s325 = smul.u32 16, %s25
          %s327 = ssub.s32 4096, 4096
          %328 = vsyncadd %s321, %s327
          %s329 = smul.addr %s325, 2
          %s330 = sadd.s32 %s26, %s329
          %s331 = smul.addr %s330, 64
          %s332 = scalar_lea.hbm %s2, %s331
          %s334 = sshll.u32 1, 14
          %s335 = sxor.u32 4294967295, %s334
          %s337 = sld [smem:[#allocation0]]
          %s338 = sadd.s32 2, %s337
          %s340 = sshll.u32 7, 26
          %s341 = sxor.u32 4294967295, %s340
          %s342 = sand.u32 0, %s341
          %s343 = sshll.u32 %s338, 26
          %s344 = sor.u32 %s342, %s343
          %s345 = sshll.u32 %s324, 4
          %s346 = int_to_ptr.vmem [resolvable:$true] %s345
          %352 = sst [smem:[#allocation6]] 4096
          %s353 = scalar_lea.smem [#allocation6], 1
          %354 = sst [smem:[%s353]] 1024
          %s355 = scalar_lea.smem [#allocation6], 2
          %356 = sst [smem:[%s355]] 16
          %s357 = scalar_lea.smem [#allocation6], 3
          %358 = sst [smem:[%s357]] 128
          %s359 = scalar_lea.smem [#allocation6], 4
          %360 = sst [smem:[%s359]] 64
          %s361 = scalar_lea.smem [#allocation6], 5
          %362 = sst [smem:[%s361]] 4
          %364 = dma.general %s332, 4096, %s346, %s321, [#allocation5], [#allocation6], %s344, 0
        $region52: #{tpu_custom_call.1} parent=39 // pred_fallthru
          _
      $region40: #{tpu_custom_call.1} parent=5 // pred_fallthru
        _
      %p365 = scmp.le.s32.totalorder 1, %s18
      %p366 = scmp.lt.s32.totalorder %s18, 5
      %p367 = pnand %p365, %p366
      %p368 = pneg %p367
      // Predicated region
      $region53: #{tpu_custom_call.1} parent=5 // pred_check
        _
      $region54: #{tpu_custom_call.1} parent=5 // pred_check_branch
        %370 = sbr.rel (%p367) target = $region56
      $region55: #{tpu_custom_call.1} parent=5 // pred_region
        %s371 = ssub.s32 %s18, 1
        %s372 = sand.u32 %s97, 1
        %s373 = scalar_lea.sflag [#allocation4], %s372
        %s374 = sand.u32 %s97, 1
        %s375 = smul.addr %s374, 256
        %s376 = scalar_lea.vmem [#allocation3], %s375
        // Predicated region
        $region57: #{tpu_custom_call.1} parent=55 // pred_check
          %p377 = pneg %p110
        $region58: #{tpu_custom_call.1} parent=55 // pred_check_branch
          %379 = sbr.rel (%p377) target = $region60
        $region59: #{tpu_custom_call.1} parent=55 // pred_region
          %380 = dma.done %s373, 4096
        $region60: #{tpu_custom_call.1} parent=55 // pred_fallthru
          _
        %s381 = smul.u32 16, %s27
        %p382 = scmp.lt.s32.totalorder %s381, 31
        %s383 = scalar_select %p382, %s381, 31
        %s384 = smul.addr %s383, 8
        %s385 = scalar_lea.vmem %s0, %s384
        %p386 = pneg %p56
        %p387 = pneg %p53
        %s388 = smul.u32 16, %s28
        %p389 = scmp.lt.s32.totalorder %s388, 31
        %s390 = scalar_select %p389, %s388, 31
        %s391 = smul.addr %s390, 8
        %s392 = scalar_lea.vmem %s1, %s391
        %p393 = pneg %p82
        %p394 = pneg %p79
        %s395 = sand.u32 %s97, 1
        %s396 = scalar_lea.sflag [#allocation4], %s395
        %s397 = sand.u32 %s97, 1
        %s398 = smul.addr %s397, 256
        %s399 = scalar_lea.vmem [#allocation3], %s398
        %p400 = pneg %p110
        %p401 = pneg %p107
        %p402 = pneg %p131
        %p403 = pneg %p128
        %p404 = pneg %p152
        %p405 = pneg %p149
        %p406 = pneg %p173
        %p407 = pneg %p170
        %p408 = pneg %p194
        %p409 = pneg %p191
        %p410 = pneg %p215
        %p411 = pneg %p212
        %p412 = pneg %p236
        %p413 = pneg %p233
        %p414 = pneg %p262
        %p415 = pneg %p259
        %s416 = smul.u32 16, %s27
        %p417 = scmp.lt.s32.totalorder %s416, 31
        %s418 = scalar_select %p417, %s416, 31
        %s419 = smul.addr %s418, 8
        %s420 = scalar_lea.vmem %s9, %s419
        %s421 = smul.u32 16, %s27
        %p422 = scmp.lt.s32.totalorder %s421, 31
        %s423 = scalar_select %p422, %s421, 31
        %s424 = smul.addr %s423, 8
        %s425 = scalar_lea.vmem %s0, %s424
        %s426 = smul.u32 16, %s27
        %s427 = smul.u32 16, %s28
        %p428 = scmp.lt.s32.totalorder %s427, 31
        %s429 = scalar_select %p428, %s427, 31
        %s430 = smul.addr %s429, 8
        %s431 = scalar_lea.vmem %s1, %s430
        %s432 = smul.u32 16, %s28
        %s433 = smul.u32 16, %s27
        %s434 = smul.u32 16, %s27
        %p435 = scmp.lt.s32.totalorder %s434, 31
        %s436 = scalar_select %p435, %s434, 31
        %s437 = smul.addr %s436, 8
        %s438 = scalar_lea.vmem %s9, %s437
        %s439 = smul.u32 16, %s27
        %p440 = scmp.eq.s32.totalorder %s28, 0
        // Predicated region
        $region61: #{tpu_custom_call.1} parent=55 // pred_check
          %p441 = pneg %p440
        $region62: #{tpu_custom_call.1} parent=55 // pred_check_branch
          %443 = sbr.rel (%p441) target = $region64
        $region63: #{tpu_custom_call.1} parent=55 // pred_region
          %vm444 = vcmask 261120
          %445 = vst.msk [vmem:[#allocation2] sm:$0xff] %vm444, 0.0
          %446 = vst.msk [vmem:[#allocation2 + $0x8] sm:$0xff] %vm444, 0.0
          %447 = vst.msk [vmem:[#allocation2 + $0x10] sm:$0xff] %vm444, 0.0
          %448 = vst.msk [vmem:[#allocation2 + $0x18] sm:$0xff] %vm444, 0.0
          %449 = vst.msk [vmem:[#allocation2 + $0x20] sm:$0xff] %vm444, 0.0
          %450 = vst.msk [vmem:[#allocation2 + $0x28] sm:$0xff] %vm444, 0.0
          %451 = vst.msk [vmem:[#allocation2 + $0x30] sm:$0xff] %vm444, 0.0
          %452 = vst.msk [vmem:[#allocation2 + $0x38] sm:$0xff] %vm444, 0.0
          %453 = vst.msk [vmem:[#allocation2 + $0x40] sm:$0xff] %vm444, 0.0
          %454 = vst.msk [vmem:[#allocation2 + $0x48] sm:$0xff] %vm444, 0.0
          %455 = vst.msk [vmem:[#allocation2 + $0x50] sm:$0xff] %vm444, 0.0
          %456 = vst.msk [vmem:[#allocation2 + $0x58] sm:$0xff] %vm444, 0.0
          %457 = vst.msk [vmem:[#allocation2 + $0x60] sm:$0xff] %vm444, 0.0
          %458 = vst.msk [vmem:[#allocation2 + $0x68] sm:$0xff] %vm444, 0.0
          %459 = vst.msk [vmem:[#allocation2 + $0x70] sm:$0xff] %vm444, 0.0
          %460 = vst.msk [vmem:[#allocation2 + $0x78] sm:$0xff] %vm444, 0.0
        $region64: #{tpu_custom_call.1} parent=55 // pred_fallthru
          _
        %v461 = vld [vmem:[%s431] sm:$0xff]
        %v462 = vld [vmem:[%s431 + $0x8] sm:$0xff]
        %v463 = vld [vmem:[%s431 + $0x10] sm:$0xff]
        %v464 = vld [vmem:[%s431 + $0x18] sm:$0xff]
        %v465 = vld [vmem:[%s431 + $0x20] sm:$0xff]
        %v466 = vld [vmem:[%s431 + $0x28] sm:$0xff]
        %v467 = vld [vmem:[%s431 + $0x30] sm:$0xff]
        %v468 = vld [vmem:[%s431 + $0x38] sm:$0xff]
        %v469 = vld [vmem:[%s431 + $0x40] sm:$0xff]
        %v470 = vld [vmem:[%s431 + $0x48] sm:$0xff]
        %v471 = vld [vmem:[%s431 + $0x50] sm:$0xff]
        %v472 = vld [vmem:[%s431 + $0x58] sm:$0xff]
        %v473 = vld [vmem:[%s431 + $0x60] sm:$0xff]
        %v474 = vld [vmem:[%s431 + $0x68] sm:$0xff]
        %v475 = vld [vmem:[%s431 + $0x70] sm:$0xff]
        %v476 = vld [vmem:[%s431 + $0x78] sm:$0xff]
        %v477 = vld [vmem:[%s3] sm:$0xff]
        %v478 = vld [vmem:[%s3 + $0x8] sm:$0xff]
        %v479 = vld [vmem:[%s3 + $0x10] sm:$0xff]
        %v480 = vld [vmem:[%s3 + $0x18] sm:$0xff]
        %v481 = vld [vmem:[%s3 + $0x20] sm:$0xff]
        %v482 = vld [vmem:[%s3 + $0x28] sm:$0xff]
        %v483 = vld [vmem:[%s3 + $0x30] sm:$0xff]
        %v484 = vld [vmem:[%s3 + $0x38] sm:$0xff]
        %vm485 = vcmask 261120
        %v487 = vsel %vm485, %v461, 0
        %v490 = vsel %vm485, %v462, 0
        %v493 = vsel %vm485, %v463, 0
        %v496 = vsel %vm485, %v464, 0
        %v499 = vsel %vm485, %v465, 0
        %v502 = vsel %vm485, %v466, 0
        %v505 = vsel %vm485, %v467, 0
        %v508 = vsel %vm485, %v468, 0
        %v511 = vsel %vm485, %v469, 0
        %v514 = vsel %vm485, %v470, 0
        %v517 = vsel %vm485, %v471, 0
        %v520 = vsel %vm485, %v472, 0
        %v523 = vsel %vm485, %v473, 0
        %v526 = vsel %vm485, %v474, 0
        %v529 = vsel %vm485, %v475, 0
        %v532 = vsel %vm485, %v476, 0
        %534 = vmatprep.subr.mxu0 %v478
        %535 = vmatpush1.msra.mxu0 %v477
        %536 = vmatprep.subr.mxu0 %v480
        %537 = vmatpush1.msra.mxu0 %v479
        %538 = vmatprep.subr.mxu0 %v482
        %539 = vmatpush1.msra.mxu0 %v481
        %540 = vmatprep.subr.mxu0 %v484
        %541 = vmatpush1.msra.mxu0 %v483
        %542 = vmatprep.subr.mxu0 0.0
        %543 = vmatpush1.msra.mxu0 0.0
        %544 = vmatprep.subr.mxu0 0.0
        %545 = vmatpush1.msra.mxu0 0.0
        %546 = vmatprep.subr.mxu0 0.0
        %547 = vmatpush1.msra.mxu0 0.0
        %548 = vmatprep.subr.mxu0 0.0
        %549 = vmatpush1.msra.mxu0 0.0
        %550 = vmatprep.subr.mxu0 0.0
        %551 = vmatpush1.msra.mxu0 0.0
        %552 = vmatprep.subr.mxu0 0.0
        %553 = vmatpush1.msra.mxu0 0.0
        %554 = vmatprep.subr.mxu0 0.0
        %555 = vmatpush1.msra.mxu0 0.0
        %556 = vmatprep.subr.mxu0 0.0
        %557 = vmatpush1.msra.mxu0 0.0
        %558 = vmatprep.subr.mxu0 0.0
        %559 = vmatpush1.msra.mxu0 0.0
        %560 = vmatprep.subr.mxu0 0.0
        %561 = vmatpush1.msra.mxu0 0.0
        %562 = vmatprep.subr.mxu0 0.0
        %563 = vmatpush1.msra.mxu0 0.0
        %564 = vmatprep.subr.mxu0 0.0
        %565 = vmatpush1.msra.mxu0 0.0
        %566 = vmatprep.subr.mxu0 0.0
        %567 = vmatpush1.msra.mxu0 0.0
        %568 = vmatprep.subr.mxu0 0.0
        %569 = vmatpush1.msra.mxu0 0.0
        %570 = vmatprep.subr.mxu0 0.0
        %571 = vmatpush1.msra.mxu0 0.0
        %572 = vmatprep.subr.mxu0 0.0
        %573 = vmatpush1.msra.mxu0 0.0
        %574 = vmatprep.subr.mxu0 0.0
        %575 = vmatpush1.msra.mxu0 0.0
        %576 = vmatprep.subr.mxu0 0.0
        %577 = vmatpush1.msra.mxu0 0.0
        %578 = vmatprep.subr.mxu0 0.0
        %579 = vmatpush1.msra.mxu0 0.0
        %580 = vmatprep.subr.mxu0 0.0
        %581 = vmatpush1.msra.mxu0 0.0
        %582 = vmatprep.subr.mxu0 0.0
        %583 = vmatpush1.msra.mxu0 0.0
        %584 = vmatprep.subr.mxu0 0.0
        %585 = vmatpush1.msra.mxu0 0.0
        %586 = vmatprep.subr.mxu0 0.0
        %587 = vmatpush1.msra.mxu0 0.0
        %588 = vmatprep.subr.mxu0 0.0
        %589 = vmatpush1.msra.mxu0 0.0
        %590 = vmatprep.subr.mxu0 0.0
        %591 = vmatpush1.msra.mxu0 0.0
        %592 = vmatprep.subr.mxu0 0.0
        %593 = vmatpush1.msra.mxu0 0.0
        %594 = vmatprep.subr.mxu0 0.0
        %595 = vmatpush1.msra.mxu0 0.0
        %596 = vmatprep.subr.mxu0 0.0
        %597 = vmatpush1.msra.mxu0 0.0
        %598 = vmatprep.mubr.f32.mxu0 0.0
        %599 = vmatmul.mubr.f32.gmra.mrb[0].mxu0 %v487
        %v600 = vpop.f32.mrb[0].mxu0
        %v601 = vadd.f32 0.0, %v600
        %v602 = vpop.f32.mrb[0].mxu0
        %v603 = vadd.f32 0.0, %v602
        %604 = vmatprep.mubr.f32.mxu0 0.0
        %605 = vmatmul.mubr.f32.gmra.mrb[0].mxu0 %v490
        %v606 = vpop.f32.mrb[0].mxu0
        %v607 = vadd.f32 0.0, %v606
        %v608 = vpop.f32.mrb[0].mxu0
        %v609 = vadd.f32 0.0, %v608
        %610 = vmatprep.mubr.f32.mxu0 0.0
        %611 = vmatmul.mubr.f32.gmra.mrb[0].mxu0 %v493
        %v612 = vpop.f32.mrb[0].mxu0
        %v613 = vadd.f32 0.0, %v612
        %v614 = vpop.f32.mrb[0].mxu0
        %v615 = vadd.f32 0.0, %v614
        %616 = vmatprep.mubr.f32.mxu0 0.0
        %617 = vmatmul.mubr.f32.gmra.mrb[0].mxu0 %v496
        %v618 = vpop.f32.mrb[0].mxu0
        %v619 = vadd.f32 0.0, %v618
        %v620 = vpop.f32.mrb[0].mxu0
        %v621 = vadd.f32 0.0, %v620
        %622 = vmatprep.mubr.f32.mxu0 0.0
        %623 = vmatmul.mubr.f32.gmra.mrb[0].mxu0 %v499
        %v624 = vpop.f32.mrb[0].mxu0
        %v625 = vadd.f32 0.0, %v624
        %v626 = vpop.f32.mrb[0].mxu0
        %v627 = vadd.f32 0.0, %v626
        %628 = vmatprep.mubr.f32.mxu0 0.0
        %629 = vmatmul.mubr.f32.gmra.mrb[0].mxu0 %v502
        %v630 = vpop.f32.mrb[0].mxu0
        %v631 = vadd.f32 0.0, %v630
        %v632 = vpop.f32.mrb[0].mxu0
        %v633 = vadd.f32 0.0, %v632
        %634 = vmatprep.mubr.f32.mxu0 0.0
        %635 = vmatmul.mubr.f32.gmra.mrb[0].mxu0 %v505
        %v636 = vpop.f32.mrb[0].mxu0
        %v637 = vadd.f32 0.0, %v636
        %v638 = vpop.f32.mrb[0].mxu0
        %v639 = vadd.f32 0.0, %v638
        %640 = vmatprep.mubr.f32.mxu0 0.0
        %641 = vmatmul.mubr.f32.gmra.mrb[0].mxu0 %v508
        %v642 = vpop.f32.mrb[0].mxu0
        %v643 = vadd.f32 0.0, %v642
        %v644 = vpop.f32.mrb[0].mxu0
        %v645 = vadd.f32 0.0, %v644
        %646 = vmatprep.mubr.f32.mxu0 0.0
        %647 = vmatmul.mubr.f32.gmra.mrb[0].mxu0 %v511
        %v648 = vpop.f32.mrb[0].mxu0
        %v649 = vadd.f32 0.0, %v648
        %v650 = vpop.f32.mrb[0].mxu0
        %v651 = vadd.f32 0.0, %v650
        %652 = vmatprep.mubr.f32.mxu0 0.0
        %653 = vmatmul.mubr.f32.gmra.mrb[0].mxu0 %v514
        %v654 = vpop.f32.mrb[0].mxu0
        %v655 = vadd.f32 0.0, %v654
        %v656 = vpop.f32.mrb[0].mxu0
        %v657 = vadd.f32 0.0, %v656
        %658 = vmatprep.mubr.f32.mxu0 0.0
        %659 = vmatmul.mubr.f32.gmra.mrb[0].mxu0 %v517
        %v660 = vpop.f32.mrb[0].mxu0
        %v661 = vadd.f32 0.0, %v660
        %v662 = vpop.f32.mrb[0].mxu0
        %v663 = vadd.f32 0.0, %v662
        %664 = vmatprep.mubr.f32.mxu0 0.0
        %665 = vmatmul.mubr.f32.gmra.mrb[0].mxu0 %v520
        %v666 = vpop.f32.mrb[0].mxu0
        %v667 = vadd.f32 0.0, %v666
        %v668 = vpop.f32.mrb[0].mxu0
        %v669 = vadd.f32 0.0, %v668
        %670 = vmatprep.mubr.f32.mxu0 0.0
        %671 = vmatmul.mubr.f32.gmra.mrb[0].mxu0 %v523
        %v672 = vpop.f32.mrb[0].mxu0
        %v673 = vadd.f32 0.0, %v672
        %v674 = vpop.f32.mrb[0].mxu0
        %v675 = vadd.f32 0.0, %v674
        %676 = vmatprep.mubr.f32.mxu0 0.0
        %677 = vmatmul.mubr.f32.gmra.mrb[0].mxu0 %v526
        %v678 = vpop.f32.mrb[0].mxu0
        %v679 = vadd.f32 0.0, %v678
        %v680 = vpop.f32.mrb[0].mxu0
        %v681 = vadd.f32 0.0, %v680
        %682 = vmatprep.mubr.f32.mxu0 0.0
        %683 = vmatmul.mubr.f32.gmra.mrb[0].mxu0 %v529
        %v684 = vpop.f32.mrb[0].mxu0
        %v685 = vadd.f32 0.0, %v684
        %v686 = vpop.f32.mrb[0].mxu0
        %v687 = vadd.f32 0.0, %v686
        %688 = vmatprep.mubr.f32.mxu0 0.0
        %689 = vmatmul.mubr.f32.gmra.mrb[0].mxu0 %v532
        %v690 = vpop.f32.mrb[0].mxu0
        %v691 = vadd.f32 0.0, %v690
        %v692 = vpop.f32.mrb[0].mxu0
        %v693 = vadd.f32 0.0, %v692
        %694 = vdwg.mxu0
        %p695 = scmp.eq.s32.totalorder %s28, %s27
        // Predicated region
        $region65: #{tpu_custom_call.1} parent=55 // pred_check
          %p696 = pneg %p695
        $region66: #{tpu_custom_call.1} parent=55 // pred_check_branch
          %698 = sbr.rel (%p696) target = $region68
        $region67: #{tpu_custom_call.1} parent=55 // pred_region
          %v699 = vld [vmem:[#allocation2] sm:$0xff]
          %v700 = vld [vmem:[#allocation2 + $0x8] sm:$0xff]
          %v701 = vld [vmem:[#allocation2 + $0x10] sm:$0xff]
          %v702 = vld [vmem:[#allocation2 + $0x18] sm:$0xff]
          %v703 = vld [vmem:[#allocation2 + $0x20] sm:$0xff]
          %v704 = vld [vmem:[#allocation2 + $0x28] sm:$0xff]
          %v705 = vld [vmem:[#allocation2 + $0x30] sm:$0xff]
          %v706 = vld [vmem:[#allocation2 + $0x38] sm:$0xff]
          %v707 = vld [vmem:[#allocation2 + $0x40] sm:$0xff]
          %v708 = vld [vmem:[#allocation2 + $0x48] sm:$0xff]
          %v709 = vld [vmem:[#allocation2 + $0x50] sm:$0xff]
          %v710 = vld [vmem:[#allocation2 + $0x58] sm:$0xff]
          %v711 = vld [vmem:[#allocation2 + $0x60] sm:$0xff]
          %v712 = vld [vmem:[#allocation2 + $0x68] sm:$0xff]
          %v713 = vld [vmem:[#allocation2 + $0x70] sm:$0xff]
          %v714 = vld [vmem:[#allocation2 + $0x78] sm:$0xff]
          %v715 = vadd.f32 %v699, %v601
          %v716 = vadd.f32 %v700, %v607
          %v717 = vadd.f32 %v701, %v613
          %v718 = vadd.f32 %v702, %v619
          %v719 = vadd.f32 %v703, %v625
          %v720 = vadd.f32 %v704, %v631
          %v721 = vadd.f32 %v705, %v637
          %v722 = vadd.f32 %v706, %v643
          %v723 = vadd.f32 %v707, %v649
          %v724 = vadd.f32 %v708, %v655
          %v725 = vadd.f32 %v709, %v661
          %v726 = vadd.f32 %v710, %v667
          %v727 = vadd.f32 %v711, %v673
          %v728 = vadd.f32 %v712, %v679
          %v729 = vadd.f32 %v713, %v685
          %v730 = vadd.f32 %v714, %v691
          %731 = vst.msk [vmem:[#allocation2] sm:$0xff] %vm485, %v715
          %732 = vst.msk [vmem:[#allocation2 + $0x8] sm:$0xff] %vm485, %v716
          %733 = vst.msk [vmem:[#allocation2 + $0x10] sm:$0xff] %vm485, %v717
          %734 = vst.msk [vmem:[#allocation2 + $0x18] sm:$0xff] %vm485, %v718
          %735 = vst.msk [vmem:[#allocation2 + $0x20] sm:$0xff] %vm485, %v719
          %736 = vst.msk [vmem:[#allocation2 + $0x28] sm:$0xff] %vm485, %v720
          %737 = vst.msk [vmem:[#allocation2 + $0x30] sm:$0xff] %vm485, %v721
          %738 = vst.msk [vmem:[#allocation2 + $0x38] sm:$0xff] %vm485, %v722
          %739 = vst.msk [vmem:[#allocation2 + $0x40] sm:$0xff] %vm485, %v723
          %740 = vst.msk [vmem:[#allocation2 + $0x48] sm:$0xff] %vm485, %v724
          %741 = vst.msk [vmem:[#allocation2 + $0x50] sm:$0xff] %vm485, %v725
          %742 = vst.msk [vmem:[#allocation2 + $0x58] sm:$0xff] %vm485, %v726
          %743 = vst.msk [vmem:[#allocation2 + $0x60] sm:$0xff] %vm485, %v727
          %744 = vst.msk [vmem:[#allocation2 + $0x68] sm:$0xff] %vm485, %v728
          %745 = vst.msk [vmem:[#allocation2 + $0x70] sm:$0xff] %vm485, %v729
          %746 = vst.msk [vmem:[#allocation2 + $0x78] sm:$0xff] %vm485, %v730
        $region68: #{tpu_custom_call.1} parent=55 // pred_fallthru
          _
        %v747 = vld [vmem:[#allocation2] sm:$0xff]
        %v748 = vld [vmem:[#allocation2 + $0x8] sm:$0xff]
        %v749 = vld [vmem:[#allocation2 + $0x10] sm:$0xff]
        %v750 = vld [vmem:[#allocation2 + $0x18] sm:$0xff]
        %v751 = vld [vmem:[#allocation2 + $0x20] sm:$0xff]
        %v752 = vld [vmem:[#allocation2 + $0x28] sm:$0xff]
        %v753 = vld [vmem:[#allocation2 + $0x30] sm:$0xff]
        %v754 = vld [vmem:[#allocation2 + $0x38] sm:$0xff]
        %v755 = vld [vmem:[#allocation2 + $0x40] sm:$0xff]
        %v756 = vld [vmem:[#allocation2 + $0x48] sm:$0xff]
        %v757 = vld [vmem:[#allocation2 + $0x50] sm:$0xff]
        %v758 = vld [vmem:[#allocation2 + $0x58] sm:$0xff]
        %v759 = vld [vmem:[#allocation2 + $0x60] sm:$0xff]
        %v760 = vld [vmem:[#allocation2 + $0x68] sm:$0xff]
        %v761 = vld [vmem:[#allocation2 + $0x70] sm:$0xff]
        %v762 = vld [vmem:[#allocation2 + $0x78] sm:$0xff]
        %v763 = vld [vmem:[%s376] sm:$0xf]
        %v764 = vld [vmem:[%s376 + $0x4] sm:$0xf]
        %v765 = vld [vmem:[%s376 + $0x8] sm:$0xf]
        %v766 = vld [vmem:[%s376 + $0xc] sm:$0xf]
        %v767 = vld [vmem:[%s376 + $0x10] sm:$0xf]
        %v768 = vld [vmem:[%s376 + $0x14] sm:$0xf]
        %v769 = vld [vmem:[%s376 + $0x18] sm:$0xf]
        %v770 = vld [vmem:[%s376 + $0x1c] sm:$0xf]
        %v771 = vld [vmem:[%s376 + $0x20] sm:$0xf]
        %v772 = vld [vmem:[%s376 + $0x24] sm:$0xf]
        %v773 = vld [vmem:[%s376 + $0x28] sm:$0xf]
        %v774 = vld [vmem:[%s376 + $0x2c] sm:$0xf]
        %v775 = vld [vmem:[%s376 + $0x30] sm:$0xf]
        %v776 = vld [vmem:[%s376 + $0x34] sm:$0xf]
        %v777 = vld [vmem:[%s376 + $0x38] sm:$0xf]
        %v778 = vld [vmem:[%s376 + $0x3c] sm:$0xf]
        %v779 = vunpack.c.l.bf16 %v763
        %v780 = vunpack.c.l.bf16 %v764
        %v781 = vunpack.c.l.bf16 %v765
        %v782 = vunpack.c.l.bf16 %v766
        %v783 = vunpack.c.l.bf16 %v767
        %v784 = vunpack.c.l.bf16 %v768
        %v785 = vunpack.c.l.bf16 %v769
        %v786 = vunpack.c.l.bf16 %v770
        %v787 = vunpack.c.l.bf16 %v771
        %v788 = vunpack.c.l.bf16 %v772
        %v789 = vunpack.c.l.bf16 %v773
        %v790 = vunpack.c.l.bf16 %v774
        %v791 = vunpack.c.l.bf16 %v775
        %v792 = vunpack.c.l.bf16 %v776
        %v793 = vunpack.c.l.bf16 %v777
        %v794 = vunpack.c.l.bf16 %v778
        %811 = vrot.lane.b32.xlu0 %v601, 96
        %v812 = vpop.permute.xlu0 %811
        %813 = vrot.lane.b32.xlu0 %v607, 96
        %v814 = vpop.permute.xlu0 %813
        %815 = vrot.lane.b32.xlu0 %v613, 96
        %v816 = vpop.permute.xlu0 %815
        %817 = vrot.lane.b32.xlu0 %v619, 96
        %v818 = vpop.permute.xlu0 %817
        %819 = vrot.lane.b32.xlu0 %v625, 96
        %v820 = vpop.permute.xlu0 %819
        %821 = vrot.lane.b32.xlu0 %v631, 96
        %v822 = vpop.permute.xlu0 %821
        %823 = vrot.lane.b32.xlu0 %v637, 96
        %v824 = vpop.permute.xlu0 %823
        %825 = vrot.lane.b32.xlu0 %v643, 96
        %v826 = vpop.permute.xlu0 %825
        %827 = vrot.lane.b32.xlu0 %v649, 96
        %v828 = vpop.permute.xlu0 %827
        %829 = vrot.lane.b32.xlu0 %v655, 96
        %v830 = vpop.permute.xlu0 %829
        %831 = vrot.lane.b32.xlu0 %v661, 96
        %v832 = vpop.permute.xlu0 %831
        %833 = vrot.lane.b32.xlu0 %v667, 96
        %v834 = vpop.permute.xlu0 %833
        %835 = vrot.lane.b32.xlu0 %v673, 96
        %v836 = vpop.permute.xlu0 %835
        %837 = vrot.lane.b32.xlu0 %v679, 96
        %v838 = vpop.permute.xlu0 %837
        %839 = vrot.lane.b32.xlu0 %v685, 96
        %v840 = vpop.permute.xlu0 %839
        %841 = vrot.lane.b32.xlu0 %v691, 96
        %v842 = vpop.permute.xlu0 %841
        %859 = vmatprep.subr.mxu0 0.0
        %860 = vmatpush1.msra.mxu0 %v812
        %861 = vmatprep.subr.mxu0 0.0
        %862 = vmatpush1.msra.mxu0 %v814
        %863 = vmatprep.subr.mxu0 0.0
        %864 = vmatpush1.msra.mxu0 %v816
        %865 = vmatprep.subr.mxu0 0.0
        %866 = vmatpush1.msra.mxu0 %v818
        %867 = vmatprep.subr.mxu0 0.0
        %868 = vmatpush1.msra.mxu0 %v820
        %869 = vmatprep.subr.mxu0 0.0
        %870 = vmatpush1.msra.mxu0 %v822
        %871 = vmatprep.subr.mxu0 0.0
        %872 = vmatpush1.msra.mxu0 %v824
        %873 = vmatprep.subr.mxu0 0.0
        %874 = vmatpush1.msra.mxu0 %v826
        %875 = vmatprep.subr.mxu0 0.0
        %876 = vmatpush1.msra.mxu0 %v828
        %877 = vmatprep.subr.mxu0 0.0
        %878 = vmatpush1.msra.mxu0 %v830
        %879 = vmatprep.subr.mxu0 0.0
        %880 = vmatpush1.msra.mxu0 %v832
        %881 = vmatprep.subr.mxu0 0.0
        %882 = vmatpush1.msra.mxu0 %v834
        %883 = vmatprep.subr.mxu0 0.0
        %884 = vmatpush1.msra.mxu0 %v836
        %885 = vmatprep.subr.mxu0 0.0
        %886 = vmatpush1.msra.mxu0 %v838
        %887 = vmatprep.subr.mxu0 0.0
        %888 = vmatpush1.msra.mxu0 %v840
        %889 = vmatprep.subr.mxu0 0.0
        %890 = vmatpush1.msra.mxu0 %v842
        %891 = vmatprep.subr.mxu0 0.0
        %892 = vmatpush1.msra.mxu0 0.0
        %893 = vmatprep.subr.mxu0 0.0
        %894 = vmatpush1.msra.mxu0 0.0
        %895 = vmatprep.subr.mxu0 0.0
        %896 = vmatpush1.msra.mxu0 0.0
        %897 = vmatprep.subr.mxu0 0.0
        %898 = vmatpush1.msra.mxu0 0.0
        %899 = vmatprep.subr.mxu0 0.0
        %900 = vmatpush1.msra.mxu0 0.0
        %901 = vmatprep.subr.mxu0 0.0
        %902 = vmatpush1.msra.mxu0 0.0
        %903 = vmatprep.subr.mxu0 0.0
        %904 = vmatpush1.msra.mxu0 0.0
        %905 = vmatprep.subr.mxu0 0.0
        %906 = vmatpush1.msra.mxu0 0.0
        %907 = vmatprep.subr.mxu0 0.0
        %908 = vmatpush1.msra.mxu0 0.0
        %909 = vmatprep.subr.mxu0 0.0
        %910 = vmatpush1.msra.mxu0 0.0
        %911 = vmatprep.subr.mxu0 0.0
        %912 = vmatpush1.msra.mxu0 0.0
        %913 = vmatprep.subr.mxu0 0.0
        %914 = vmatpush1.msra.mxu0 0.0
        %915 = vmatprep.subr.mxu0 0.0
        %916 = vmatpush1.msra.mxu0 0.0
        %917 = vmatprep.subr.mxu0 0.0
        %918 = vmatpush1.msra.mxu0 0.0
        %919 = vmatprep.subr.mxu0 0.0
        %920 = vmatpush1.msra.mxu0 0.0
        %921 = vmatprep.subr.mxu0 0.0
        %922 = vmatpush1.msra.mxu0 0.0
        %923 = vmatprep.mubr.f32.mxu0 0.0
        %924 = vmatmul.mubr.f32.gmra.mrb[0].mxu0 %v779
        %v925 = vpop.f32.mrb[0].mxu0
        %v926 = vadd.f32 0.0, %v925
        %v927 = vpop.f32.mrb[0].mxu0
        %928 = vmatprep.mubr.f32.mxu0 0.0
        %929 = vmatmul.mubr.f32.gmra.mrb[0].mxu0 %v780
        %v930 = vpop.f32.mrb[0].mxu0
        %v931 = vadd.f32 0.0, %v930
        %v932 = vpop.f32.mrb[0].mxu0
        %933 = vmatprep.mubr.f32.mxu0 0.0
        %934 = vmatmul.mubr.f32.gmra.mrb[0].mxu0 %v781
        %v935 = vpop.f32.mrb[0].mxu0
        %v936 = vadd.f32 0.0, %v935
        %v937 = vpop.f32.mrb[0].mxu0
        %938 = vmatprep.mubr.f32.mxu0 0.0
        %939 = vmatmul.mubr.f32.gmra.mrb[0].mxu0 %v782
        %v940 = vpop.f32.mrb[0].mxu0
        %v941 = vadd.f32 0.0, %v940
        %v942 = vpop.f32.mrb[0].mxu0
        %943 = vmatprep.mubr.f32.mxu0 0.0
        %944 = vmatmul.mubr.f32.gmra.mrb[0].mxu0 %v783
        %v945 = vpop.f32.mrb[0].mxu0
        %v946 = vadd.f32 0.0, %v945
        %v947 = vpop.f32.mrb[0].mxu0
        %948 = vmatprep.mubr.f32.mxu0 0.0
        %949 = vmatmul.mubr.f32.gmra.mrb[0].mxu0 %v784
        %v950 = vpop.f32.mrb[0].mxu0
        %v951 = vadd.f32 0.0, %v950
        %v952 = vpop.f32.mrb[0].mxu0
        %953 = vmatprep.mubr.f32.mxu0 0.0
        %954 = vmatmul.mubr.f32.gmra.mrb[0].mxu0 %v785
        %v955 = vpop.f32.mrb[0].mxu0
        %v956 = vadd.f32 0.0, %v955
        %v957 = vpop.f32.mrb[0].mxu0
        %958 = vmatprep.mubr.f32.mxu0 0.0
        %959 = vmatmul.mubr.f32.gmra.mrb[0].mxu0 %v786
        %v960 = vpop.f32.mrb[0].mxu0
        %v961 = vadd.f32 0.0, %v960
        %v962 = vpop.f32.mrb[0].mxu0
        %963 = vmatprep.mubr.f32.mxu0 0.0
        %964 = vmatmul.mubr.f32.gmra.mrb[0].mxu0 %v787
        %v965 = vpop.f32.mrb[0].mxu0
        %v966 = vadd.f32 0.0, %v965
        %v967 = vpop.f32.mrb[0].mxu0
        %968 = vmatprep.mubr.f32.mxu0 0.0
        %969 = vmatmul.mubr.f32.gmra.mrb[0].mxu0 %v788
        %v970 = vpop.f32.mrb[0].mxu0
        %v971 = vadd.f32 0.0, %v970
        %v972 = vpop.f32.mrb[0].mxu0
        %973 = vmatprep.mubr.f32.mxu0 0.0
        %974 = vmatmul.mubr.f32.gmra.mrb[0].mxu0 %v789
        %v975 = vpop.f32.mrb[0].mxu0
        %v976 = vadd.f32 0.0, %v975
        %v977 = vpop.f32.mrb[0].mxu0
        %978 = vmatprep.mubr.f32.mxu0 0.0
        %979 = vmatmul.mubr.f32.gmra.mrb[0].mxu0 %v790
        %v980 = vpop.f32.mrb[0].mxu0
        %v981 = vadd.f32 0.0, %v980
        %v982 = vpop.f32.mrb[0].mxu0
        %983 = vmatprep.mubr.f32.mxu0 0.0
        %984 = vmatmul.mubr.f32.gmra.mrb[0].mxu0 %v791
        %v985 = vpop.f32.mrb[0].mxu0
        %v986 = vadd.f32 0.0, %v985
        %v987 = vpop.f32.mrb[0].mxu0
        %988 = vmatprep.mubr.f32.mxu0 0.0
        %989 = vmatmul.mubr.f32.gmra.mrb[0].mxu0 %v792
        %v990 = vpop.f32.mrb[0].mxu0
        %v991 = vadd.f32 0.0, %v990
        %v992 = vpop.f32.mrb[0].mxu0
        %993 = vmatprep.mubr.f32.mxu0 0.0
        %994 = vmatmul.mubr.f32.gmra.mrb[0].mxu0 %v793
        %v995 = vpop.f32.mrb[0].mxu0
        %v996 = vadd.f32 0.0, %v995
        %v997 = vpop.f32.mrb[0].mxu0
        %998 = vmatprep.mubr.f32.mxu0 0.0
        %999 = vmatmul.mubr.f32.gmra.mrb[0].mxu0 %v794
        %v1000 = vpop.f32.mrb[0].mxu0
        %v1001 = vadd.f32 0.0, %v1000
        %v1002 = vpop.f32.mrb[0].mxu0
        %1003 = vdwg.mxu0
        %v1004 = vadd.f32 %v747, %v926
        %v1005 = vadd.f32 %v748, %v931
        %v1006 = vadd.f32 %v749, %v936
        %v1007 = vadd.f32 %v750, %v941
        %v1008 = vadd.f32 %v751, %v946
        %v1009 = vadd.f32 %v752, %v951
        %v1010 = vadd.f32 %v753, %v956
        %v1011 = vadd.f32 %v754, %v961
        %v1012 = vadd.f32 %v755, %v966
        %v1013 = vadd.f32 %v756, %v971
        %v1014 = vadd.f32 %v757, %v976
        %v1015 = vadd.f32 %v758, %v981
        %v1016 = vadd.f32 %v759, %v986
        %v1017 = vadd.f32 %v760, %v991
        %v1018 = vadd.f32 %v761, %v996
        %v1019 = vadd.f32 %v762, %v1001
        %1020 = vst.msk [vmem:[#allocation2] sm:$0xff] %vm485, %v1004
        %1021 = vst.msk [vmem:[#allocation2 + $0x8] sm:$0xff] %vm485, %v1005
        %1022 = vst.msk [vmem:[#allocation2 + $0x10] sm:$0xff] %vm485, %v1006
        %1023 = vst.msk [vmem:[#allocation2 + $0x18] sm:$0xff] %vm485, %v1007
        %1024 = vst.msk [vmem:[#allocation2 + $0x20] sm:$0xff] %vm485, %v1008
        %1025 = vst.msk [vmem:[#allocation2 + $0x28] sm:$0xff] %vm485, %v1009
        %1026 = vst.msk [vmem:[#allocation2 + $0x30] sm:$0xff] %vm485, %v1010
        %1027 = vst.msk [vmem:[#allocation2 + $0x38] sm:$0xff] %vm485, %v1011
        %1028 = vst.msk [vmem:[#allocation2 + $0x40] sm:$0xff] %vm485, %v1012
        %1029 = vst.msk [vmem:[#allocation2 + $0x48] sm:$0xff] %vm485, %v1013
        %1030 = vst.msk [vmem:[#allocation2 + $0x50] sm:$0xff] %vm485, %v1014
        %1031 = vst.msk [vmem:[#allocation2 + $0x58] sm:$0xff] %vm485, %v1015
        %1032 = vst.msk [vmem:[#allocation2 + $0x60] sm:$0xff] %vm485, %v1016
        %1033 = vst.msk [vmem:[#allocation2 + $0x68] sm:$0xff] %vm485, %v1017
        %1034 = vst.msk [vmem:[#allocation2 + $0x70] sm:$0xff] %vm485, %v1018
        %1035 = vst.msk [vmem:[#allocation2 + $0x78] sm:$0xff] %vm485, %v1019
        %v1036 = vld [vmem:[#allocation2] sm:$0xff]
        %v1037 = vld [vmem:[#allocation2 + $0x8] sm:$0xff]
        %v1038 = vld [vmem:[#allocation2 + $0x10] sm:$0xff]
        %v1039 = vld [vmem:[#allocation2 + $0x18] sm:$0xff]
        %v1040 = vld [vmem:[#allocation2 + $0x20] sm:$0xff]
        %v1041 = vld [vmem:[#allocation2 + $0x28] sm:$0xff]
        %v1042 = vld [vmem:[#allocation2 + $0x30] sm:$0xff]
        %v1043 = vld [vmem:[#allocation2 + $0x38] sm:$0xff]
        %v1044 = vld [vmem:[#allocation2 + $0x40] sm:$0xff]
        %v1045 = vld [vmem:[#allocation2 + $0x48] sm:$0xff]
        %v1046 = vld [vmem:[#allocation2 + $0x50] sm:$0xff]
        %v1047 = vld [vmem:[#allocation2 + $0x58] sm:$0xff]
        %v1048 = vld [vmem:[#allocation2 + $0x60] sm:$0xff]
        %v1049 = vld [vmem:[#allocation2 + $0x68] sm:$0xff]
        %v1050 = vld [vmem:[#allocation2 + $0x70] sm:$0xff]
        %v1051 = vld [vmem:[#allocation2 + $0x78] sm:$0xff]
        %s1052 = scalar_lea.vmem %s376, 64 [#allocation3]
        %v1053 = vld [vmem:[%s1052] sm:$0xf]
        %v1054 = vld [vmem:[%s1052 + $0x4] sm:$0xf]
        %v1055 = vld [vmem:[%s1052 + $0x8] sm:$0xf]
        %v1056 = vld [vmem:[%s1052 + $0xc] sm:$0xf]
        %v1057 = vld [vmem:[%s1052 + $0x10] sm:$0xf]
        %v1058 = vld [vmem:[%s1052 + $0x14] sm:$0xf]
        %v1059 = vld [vmem:[%s1052 + $0x18] sm:$0xf]
        %v1060 = vld [vmem:[%s1052 + $0x1c] sm:$0xf]
        %v1061 = vld [vmem:[%s1052 + $0x20] sm:$0xf]
        %v1062 = vld [vmem:[%s1052 + $0x24] sm:$0xf]
        %v1063 = vld [vmem:[%s1052 + $0x28] sm:$0xf]
        %v1064 = vld [vmem:[%s1052 + $0x2c] sm:$0xf]
        %v1065 = vld [vmem:[%s1052 + $0x30] sm:$0xf]
        %v1066 = vld [vmem:[%s1052 + $0x34] sm:$0xf]
        %v1067 = vld [vmem:[%s1052 + $0x38] sm:$0xf]
        %v1068 = vld [vmem:[%s1052 + $0x3c] sm:$0xf]
        %v1069 = vunpack.c.l.bf16 %v1053
        %v1070 = vunpack.c.l.bf16 %v1054
        %v1071 = vunpack.c.l.bf16 %v1055
        %v1072 = vunpack.c.l.bf16 %v1056
        %v1073 = vunpack.c.l.bf16 %v1057
        %v1074 = vunpack.c.l.bf16 %v1058
        %v1075 = vunpack.c.l.bf16 %v1059
        %v1076 = vunpack.c.l.bf16 %v1060
        %v1077 = vunpack.c.l.bf16 %v1061
        %v1078 = vunpack.c.l.bf16 %v1062
        %v1079 = vunpack.c.l.bf16 %v1063
        %v1080 = vunpack.c.l.bf16 %v1064
        %v1081 = vunpack.c.l.bf16 %v1065
        %v1082 = vunpack.c.l.bf16 %v1066
        %v1083 = vunpack.c.l.bf16 %v1067
        %v1084 = vunpack.c.l.bf16 %v1068
        %1085 = vrot.lane.b32.xlu0 %v601, 64
        %v1086 = vpop.permute.xlu0 %1085
        %1087 = vrot.lane.b32.xlu0 %v607, 64
        %v1088 = vpop.permute.xlu0 %1087
        %1089 = vrot.lane.b32.xlu0 %v613, 64
        %v1090 = vpop.permute.xlu0 %1089
        %1091 = vrot.lane.b32.xlu0 %v619, 64
        %v1092 = vpop.permute.xlu0 %1091
        %1093 = vrot.lane.b32.xlu0 %v625, 64
        %v1094 = vpop.permute.xlu0 %1093
        %1095 = vrot.lane.b32.xlu0 %v631, 64
        %v1096 = vpop.permute.xlu0 %1095
        %1097 = vrot.lane.b32.xlu0 %v637, 64
        %v1098 = vpop.permute.xlu0 %1097
        %1099 = vrot.lane.b32.xlu0 %v643, 64
        %v1100 = vpop.permute.xlu0 %1099
        %1101 = vrot.lane.b32.xlu0 %v649, 64
        %v1102 = vpop.permute.xlu0 %1101
        %1103 = vrot.lane.b32.xlu0 %v655, 64
        %v1104 = vpop.permute.xlu0 %1103
        %1105 = vrot.lane.b32.xlu0 %v661, 64
        %v1106 = vpop.permute.xlu0 %1105
        %1107 = vrot.lane.b32.xlu0 %v667, 64
        %v1108 = vpop.permute.xlu0 %1107
        %1109 = vrot.lane.b32.xlu0 %v673, 64
        %v1110 = vpop.permute.xlu0 %1109
        %1111 = vrot.lane.b32.xlu0 %v679, 64
        %v1112 = vpop.permute.xlu0 %1111
        %1113 = vrot.lane.b32.xlu0 %v685, 64
        %v1114 = vpop.permute.xlu0 %1113
        %1115 = vrot.lane.b32.xlu0 %v691, 64
        %v1116 = vpop.permute.xlu0 %1115
        %1133 = vmatprep.subr.mxu0 0.0
        %1134 = vmatpush1.msra.mxu0 %v1086
        %1135 = vmatprep.subr.mxu0 0.0
        %1136 = vmatpush1.msra.mxu0 %v1088
        %1137 = vmatprep.subr.mxu0 0.0
        %1138 = vmatpush1.msra.mxu0 %v1090
        %1139 = vmatprep.subr.mxu0 0.0
        %1140 = vmatpush1.msra.mxu0 %v1092
        %1141 = vmatprep.subr.mxu0 0.0
        %1142 = vmatpush1.msra.mxu0 %v1094
        %1143 = vmatprep.subr.mxu0 0.0
        %1144 = vmatpush1.msra.mxu0 %v1096
        %1145 = vmatprep.subr.mxu0 0.0
        %1146 = vmatpush1.msra.mxu0 %v1098
        %1147 = vmatprep.subr.mxu0 0.0
        %1148 = vmatpush1.msra.mxu0 %v1100
        %1149 = vmatprep.subr.mxu0 0.0
        %1150 = vmatpush1.msra.mxu0 %v1102
        %1151 = vmatprep.subr.mxu0 0.0
        %1152 = vmatpush1.msra.mxu0 %v1104
        %1153 = vmatprep.subr.mxu0 0.0
        %1154 = vmatpush1.msra.mxu0 %v1106
        %1155 = vmatprep.subr.mxu0 0.0
        %1156 = vmatpush1.msra.mxu0 %v1108
        %1157 = vmatprep.subr.mxu0 0.0
        %1158 = vmatpush1.msra.mxu0 %v1110
        %1159 = vmatprep.subr.mxu0 0.0
        %1160 = vmatpush1.msra.mxu0 %v1112
        %1161 = vmatprep.subr.mxu0 0.0
        %1162 = vmatpush1.msra.mxu0 %v1114
        %1163 = vmatprep.subr.mxu0 0.0
        %1164 = vmatpush1.msra.mxu0 %v1116
        %1165 = vmatprep.subr.mxu0 0.0
        %1166 = vmatpush1.msra.mxu0 0.0
        %1167 = vmatprep.subr.mxu0 0.0
        %1168 = vmatpush1.msra.mxu0 0.0
        %1169 = vmatprep.subr.mxu0 0.0
        %1170 = vmatpush1.msra.mxu0 0.0
        %1171 = vmatprep.subr.mxu0 0.0
        %1172 = vmatpush1.msra.mxu0 0.0
        %1173 = vmatprep.subr.mxu0 0.0
        %1174 = vmatpush1.msra.mxu0 0.0
        %1175 = vmatprep.subr.mxu0 0.0
        %1176 = vmatpush1.msra.mxu0 0.0
        %1177 = vmatprep.subr.mxu0 0.0
        %1178 = vmatpush1.msra.mxu0 0.0
        %1179 = vmatprep.subr.mxu0 0.0
        %1180 = vmatpush1.msra.mxu0 0.0
        %1181 = vmatprep.subr.mxu0 0.0
        %1182 = vmatpush1.msra.mxu0 0.0
        %1183 = vmatprep.subr.mxu0 0.0
        %1184 = vmatpush1.msra.mxu0 0.0
        %1185 = vmatprep.subr.mxu0 0.0
        %1186 = vmatpush1.msra.mxu0 0.0
        %1187 = vmatprep.subr.mxu0 0.0
        %1188 = vmatpush1.msra.mxu0 0.0
        %1189 = vmatprep.subr.mxu0 0.0
        %1190 = vmatpush1.msra.mxu0 0.0
        %1191 = vmatprep.subr.mxu0 0.0
        %1192 = vmatpush1.msra.mxu0 0.0
        %1193 = vmatprep.subr.mxu0 0.0
        %1194 = vmatpush1.msra.mxu0 0.0
        %1195 = vmatprep.subr.mxu0 0.0
        %1196 = vmatpush1.msra.mxu0 0.0
        %1197 = vmatprep.mubr.f32.mxu0 0.0
        %1198 = vmatmul.mubr.f32.gmra.mrb[0].mxu0 %v1069
        %v1199 = vpop.f32.mrb[0].mxu0
        %v1200 = vadd.f32 0.0, %v1199
        %v1201 = vpop.f32.mrb[0].mxu0
        %1202 = vmatprep.mubr.f32.mxu0 0.0
        %1203 = vmatmul.mubr.f32.gmra.mrb[0].mxu0 %v1070
        %v1204 = vpop.f32.mrb[0].mxu0
        %v1205 = vadd.f32 0.0, %v1204
        %v1206 = vpop.f32.mrb[0].mxu0
        %1207 = vmatprep.mubr.f32.mxu0 0.0
        %1208 = vmatmul.mubr.f32.gmra.mrb[0].mxu0 %v1071
        %v1209 = vpop.f32.mrb[0].mxu0
        %v1210 = vadd.f32 0.0, %v1209
        %v1211 = vpop.f32.mrb[0].mxu0
        %1212 = vmatprep.mubr.f32.mxu0 0.0
        %1213 = vmatmul.mubr.f32.gmra.mrb[0].mxu0 %v1072
        %v1214 = vpop.f32.mrb[0].mxu0
        %v1215 = vadd.f32 0.0, %v1214
        %v1216 = vpop.f32.mrb[0].mxu0
        %1217 = vmatprep.mubr.f32.mxu0 0.0
        %1218 = vmatmul.mubr.f32.gmra.mrb[0].mxu0 %v1073
        %v1219 = vpop.f32.mrb[0].mxu0
        %v1220 = vadd.f32 0.0, %v1219
        %v1221 = vpop.f32.mrb[0].mxu0
        %1222 = vmatprep.mubr.f32.mxu0 0.0
        %1223 = vmatmul.mubr.f32.gmra.mrb[0].mxu0 %v1074
        %v1224 = vpop.f32.mrb[0].mxu0
        %v1225 = vadd.f32 0.0, %v1224
        %v1226 = vpop.f32.mrb[0].mxu0
        %1227 = vmatprep.mubr.f32.mxu0 0.0
        %1228 = vmatmul.mubr.f32.gmra.mrb[0].mxu0 %v1075
        %v1229 = vpop.f32.mrb[0].mxu0
        %v1230 = vadd.f32 0.0, %v1229
        %v1231 = vpop.f32.mrb[0].mxu0
        %1232 = vmatprep.mubr.f32.mxu0 0.0
        %1233 = vmatmul.mubr.f32.gmra.mrb[0].mxu0 %v1076
        %v1234 = vpop.f32.mrb[0].mxu0
        %v1235 = vadd.f32 0.0, %v1234
        %v1236 = vpop.f32.mrb[0].mxu0
        %1237 = vmatprep.mubr.f32.mxu0 0.0
        %1238 = vmatmul.mubr.f32.gmra.mrb[0].mxu0 %v1077
        %v1239 = vpop.f32.mrb[0].mxu0
        %v1240 = vadd.f32 0.0, %v1239
        %v1241 = vpop.f32.mrb[0].mxu0
        %1242 = vmatprep.mubr.f32.mxu0 0.0
        %1243 = vmatmul.mubr.f32.gmra.mrb[0].mxu0 %v1078
        %v1244 = vpop.f32.mrb[0].mxu0
        %v1245 = vadd.f32 0.0, %v1244
        %v1246 = vpop.f32.mrb[0].mxu0
        %1247 = vmatprep.mubr.f32.mxu0 0.0
        %1248 = vmatmul.mubr.f32.gmra.mrb[0].mxu0 %v1079
        %v1249 = vpop.f32.mrb[0].mxu0
        %v1250 = vadd.f32 0.0, %v1249
        %v1251 = vpop.f32.mrb[0].mxu0
        %1252 = vmatprep.mubr.f32.mxu0 0.0
        %1253 = vmatmul.mubr.f32.gmra.mrb[0].mxu0 %v1080
        %v1254 = vpop.f32.mrb[0].mxu0
        %v1255 = vadd.f32 0.0, %v1254
        %v1256 = vpop.f32.mrb[0].mxu0
        %1257 = vmatprep.mubr.f32.mxu0 0.0
        %1258 = vmatmul.mubr.f32.gmra.mrb[0].mxu0 %v1081
        %v1259 = vpop.f32.mrb[0].mxu0
        %v1260 = vadd.f32 0.0, %v1259
        %v1261 = vpop.f32.mrb[0].mxu0
        %1262 = vmatprep.mubr.f32.mxu0 0.0
        %1263 = vmatmul.mubr.f32.gmra.mrb[0].mxu0 %v1082
        %v1264 = vpop.f32.mrb[0].mxu0
        %v1265 = vadd.f32 0.0, %v1264
        %v1266 = vpop.f32.mrb[0].mxu0
        %1267 = vmatprep.mubr.f32.mxu0 0.0
        %1268 = vmatmul.mubr.f32.gmra.mrb[0].mxu0 %v1083
        %v1269 = vpop.f32.mrb[0].mxu0
        %v1270 = vadd.f32 0.0, %v1269
        %v1271 = vpop.f32.mrb[0].mxu0
        %1272 = vmatprep.mubr.f32.mxu0 0.0
        %1273 = vmatmul.mubr.f32.gmra.mrb[0].mxu0 %v1084
        %v1274 = vpop.f32.mrb[0].mxu0
        %v1275 = vadd.f32 0.0, %v1274
        %v1276 = vpop.f32.mrb[0].mxu0
        %1277 = vdwg.mxu0
        %v1278 = vadd.f32 %v1036, %v1200
        %v1279 = vadd.f32 %v1037, %v1205
        %v1280 = vadd.f32 %v1038, %v1210
        %v1281 = vadd.f32 %v1039, %v1215
        %v1282 = vadd.f32 %v1040, %v1220
        %v1283 = vadd.f32 %v1041, %v1225
        %v1284 = vadd.f32 %v1042, %v1230
        %v1285 = vadd.f32 %v1043, %v1235
        %v1286 = vadd.f32 %v1044, %v1240
        %v1287 = vadd.f32 %v1045, %v1245
        %v1288 = vadd.f32 %v1046, %v1250
        %v1289 = vadd.f32 %v1047, %v1255
        %v1290 = vadd.f32 %v1048, %v1260
        %v1291 = vadd.f32 %v1049, %v1265
        %v1292 = vadd.f32 %v1050, %v1270
        %v1293 = vadd.f32 %v1051, %v1275
        %1294 = vst.msk [vmem:[#allocation2] sm:$0xff] %vm485, %v1278
        %1295 = vst.msk [vmem:[#allocation2 + $0x8] sm:$0xff] %vm485, %v1279
        %1296 = vst.msk [vmem:[#allocation2 + $0x10] sm:$0xff] %vm485, %v1280
        %1297 = vst.msk [vmem:[#allocation2 + $0x18] sm:$0xff] %vm485, %v1281
        %1298 = vst.msk [vmem:[#allocation2 + $0x20] sm:$0xff] %vm485, %v1282
        %1299 = vst.msk [vmem:[#allocation2 + $0x28] sm:$0xff] %vm485, %v1283
        %1300 = vst.msk [vmem:[#allocation2 + $0x30] sm:$0xff] %vm485, %v1284
        %1301 = vst.msk [vmem:[#allocation2 + $0x38] sm:$0xff] %vm485, %v1285
        %1302 = vst.msk [vmem:[#allocation2 + $0x40] sm:$0xff] %vm485, %v1286
        %1303 = vst.msk [vmem:[#allocation2 + $0x48] sm:$0xff] %vm485, %v1287
        %1304 = vst.msk [vmem:[#allocation2 + $0x50] sm:$0xff] %vm485, %v1288
        %1305 = vst.msk [vmem:[#allocation2 + $0x58] sm:$0xff] %vm485, %v1289
        %1306 = vst.msk [vmem:[#allocation2 + $0x60] sm:$0xff] %vm485, %v1290
        %1307 = vst.msk [vmem:[#allocation2 + $0x68] sm:$0xff] %vm485, %v1291
        %1308 = vst.msk [vmem:[#allocation2 + $0x70] sm:$0xff] %vm485, %v1292
        %1309 = vst.msk [vmem:[#allocation2 + $0x78] sm:$0xff] %vm485, %v1293
        %v1310 = vld [vmem:[#allocation2] sm:$0xff]
        %v1311 = vld [vmem:[#allocation2 + $0x8] sm:$0xff]
        %v1312 = vld [vmem:[#allocation2 + $0x10] sm:$0xff]
        %v1313 = vld [vmem:[#allocation2 + $0x18] sm:$0xff]
        %v1314 = vld [vmem:[#allocation2 + $0x20] sm:$0xff]
        %v1315 = vld [vmem:[#allocation2 + $0x28] sm:$0xff]
        %v1316 = vld [vmem:[#allocation2 + $0x30] sm:$0xff]
        %v1317 = vld [vmem:[#allocation2 + $0x38] sm:$0xff]
        %v1318 = vld [vmem:[#allocation2 + $0x40] sm:$0xff]
        %v1319 = vld [vmem:[#allocation2 + $0x48] sm:$0xff]
        %v1320 = vld [vmem:[#allocation2 + $0x50] sm:$0xff]
        %v1321 = vld [vmem:[#allocation2 + $0x58] sm:$0xff]
        %v1322 = vld [vmem:[#allocation2 + $0x60] sm:$0xff]
        %v1323 = vld [vmem:[#allocation2 + $0x68] sm:$0xff]
        %v1324 = vld [vmem:[#allocation2 + $0x70] sm:$0xff]
        %v1325 = vld [vmem:[#allocation2 + $0x78] sm:$0xff]
        %s1326 = scalar_lea.vmem %s376, 128 [#allocation3]
        %v1327 = vld [vmem:[%s1326] sm:$0xf]
        %v1328 = vld [vmem:[%s1326 + $0x4] sm:$0xf]
        %v1329 = vld [vmem:[%s1326 + $0x8] sm:$0xf]
        %v1330 = vld [vmem:[%s1326 + $0xc] sm:$0xf]
        %v1331 = vld [vmem:[%s1326 + $0x10] sm:$0xf]
        %v1332 = vld [vmem:[%s1326 + $0x14] sm:$0xf]
        %v1333 = vld [vmem:[%s1326 + $0x18] sm:$0xf]
        %v1334 = vld [vmem:[%s1326 + $0x1c] sm:$0xf]
        %v1335 = vld [vmem:[%s1326 + $0x20] sm:$0xf]
        %v1336 = vld [vmem:[%s1326 + $0x24] sm:$0xf]
        %v1337 = vld [vmem:[%s1326 + $0x28] sm:$0xf]
        %v1338 = vld [vmem:[%s1326 + $0x2c] sm:$0xf]
        %v1339 = vld [vmem:[%s1326 + $0x30] sm:$0xf]
        %v1340 = vld [vmem:[%s1326 + $0x34] sm:$0xf]
        %v1341 = vld [vmem:[%s1326 + $0x38] sm:$0xf]
        %v1342 = vld [vmem:[%s1326 + $0x3c] sm:$0xf]
        %v1343 = vunpack.c.l.bf16 %v1327
        %v1344 = vunpack.c.l.bf16 %v1328
        %v1345 = vunpack.c.l.bf16 %v1329
        %v1346 = vunpack.c.l.bf16 %v1330
        %v1347 = vunpack.c.l.bf16 %v1331
        %v1348 = vunpack.c.l.bf16 %v1332
        %v1349 = vunpack.c.l.bf16 %v1333
        %v1350 = vunpack.c.l.bf16 %v1334
        %v1351 = vunpack.c.l.bf16 %v1335
        %v1352 = vunpack.c.l.bf16 %v1336
        %v1353 = vunpack.c.l.bf16 %v1337
        %v1354 = vunpack.c.l.bf16 %v1338
        %v1355 = vunpack.c.l.bf16 %v1339
        %v1356 = vunpack.c.l.bf16 %v1340
        %v1357 = vunpack.c.l.bf16 %v1341
        %v1358 = vunpack.c.l.bf16 %v1342
        %1359 = vrot.lane.b32.xlu0 %v601, 32
        %v1360 = vpop.permute.xlu0 %1359
        %1361 = vrot.lane.b32.xlu0 %v607, 32
        %v1362 = vpop.permute.xlu0 %1361
        %1363 = vrot.lane.b32.xlu0 %v613, 32
        %v1364 = vpop.permute.xlu0 %1363
        %1365 = vrot.lane.b32.xlu0 %v619, 32
        %v1366 = vpop.permute.xlu0 %1365
        %1367 = vrot.lane.b32.xlu0 %v625, 32
        %v1368 = vpop.permute.xlu0 %1367
        %1369 = vrot.lane.b32.xlu0 %v631, 32
        %v1370 = vpop.permute.xlu0 %1369
        %1371 = vrot.lane.b32.xlu0 %v637, 32
        %v1372 = vpop.permute.xlu0 %1371
        %1373 = vrot.lane.b32.xlu0 %v643, 32
        %v1374 = vpop.permute.xlu0 %1373
        %1375 = vrot.lane.b32.xlu0 %v649, 32
        %v1376 = vpop.permute.xlu0 %1375
        %1377 = vrot.lane.b32.xlu0 %v655, 32
        %v1378 = vpop.permute.xlu0 %1377
        %1379 = vrot.lane.b32.xlu0 %v661, 32
        %v1380 = vpop.permute.xlu0 %1379
        %1381 = vrot.lane.b32.xlu0 %v667, 32
        %v1382 = vpop.permute.xlu0 %1381
        %1383 = vrot.lane.b32.xlu0 %v673, 32
        %v1384 = vpop.permute.xlu0 %1383
        %1385 = vrot.lane.b32.xlu0 %v679, 32
        %v1386 = vpop.permute.xlu0 %1385
        %1387 = vrot.lane.b32.xlu0 %v685, 32
        %v1388 = vpop.permute.xlu0 %1387
        %1389 = vrot.lane.b32.xlu0 %v691, 32
        %v1390 = vpop.permute.xlu0 %1389
        %1407 = vmatprep.subr.mxu0 0.0
        %1408 = vmatpush1.msra.mxu0 %v1360
        %1409 = vmatprep.subr.mxu0 0.0
        %1410 = vmatpush1.msra.mxu0 %v1362
        %1411 = vmatprep.subr.mxu0 0.0
        %1412 = vmatpush1.msra.mxu0 %v1364
        %1413 = vmatprep.subr.mxu0 0.0
        %1414 = vmatpush1.msra.mxu0 %v1366
        %1415 = vmatprep.subr.mxu0 0.0
        %1416 = vmatpush1.msra.mxu0 %v1368
        %1417 = vmatprep.subr.mxu0 0.0
        %1418 = vmatpush1.msra.mxu0 %v1370
        %1419 = vmatprep.subr.mxu0 0.0
        %1420 = vmatpush1.msra.mxu0 %v1372
        %1421 = vmatprep.subr.mxu0 0.0
        %1422 = vmatpush1.msra.mxu0 %v1374
        %1423 = vmatprep.subr.mxu0 0.0
        %1424 = vmatpush1.msra.mxu0 %v1376
        %1425 = vmatprep.subr.mxu0 0.0
        %1426 = vmatpush1.msra.mxu0 %v1378
        %1427 = vmatprep.subr.mxu0 0.0
        %1428 = vmatpush1.msra.mxu0 %v1380
        %1429 = vmatprep.subr.mxu0 0.0
        %1430 = vmatpush1.msra.mxu0 %v1382
        %1431 = vmatprep.subr.mxu0 0.0
        %1432 = vmatpush1.msra.mxu0 %v1384
        %1433 = vmatprep.subr.mxu0 0.0
        %1434 = vmatpush1.msra.mxu0 %v1386
        %1435 = vmatprep.subr.mxu0 0.0
        %1436 = vmatpush1.msra.mxu0 %v1388
        %1437 = vmatprep.subr.mxu0 0.0
        %1438 = vmatpush1.msra.mxu0 %v1390
        %1439 = vmatprep.subr.mxu0 0.0
        %1440 = vmatpush1.msra.mxu0 0.0
        %1441 = vmatprep.subr.mxu0 0.0
        %1442 = vmatpush1.msra.mxu0 0.0
        %1443 = vmatprep.subr.mxu0 0.0
        %1444 = vmatpush1.msra.mxu0 0.0
        %1445 = vmatprep.subr.mxu0 0.0
        %1446 = vmatpush1.msra.mxu0 0.0
        %1447 = vmatprep.subr.mxu0 0.0
        %1448 = vmatpush1.msra.mxu0 0.0
        %1449 = vmatprep.subr.mxu0 0.0
        %1450 = vmatpush1.msra.mxu0 0.0
        %1451 = vmatprep.subr.mxu0 0.0
        %1452 = vmatpush1.msra.mxu0 0.0
        %1453 = vmatprep.subr.mxu0 0.0
        %1454 = vmatpush1.msra.mxu0 0.0
        %1455 = vmatprep.subr.mxu0 0.0
        %1456 = vmatpush1.msra.mxu0 0.0
        %1457 = vmatprep.subr.mxu0 0.0
        %1458 = vmatpush1.msra.mxu0 0.0
        %1459 = vmatprep.subr.mxu0 0.0
        %1460 = vmatpush1.msra.mxu0 0.0
        %1461 = vmatprep.subr.mxu0 0.0
        %1462 = vmatpush1.msra.mxu0 0.0
        %1463 = vmatprep.subr.mxu0 0.0
        %1464 = vmatpush1.msra.mxu0 0.0
        %1465 = vmatprep.subr.mxu0 0.0
        %1466 = vmatpush1.msra.mxu0 0.0
        %1467 = vmatprep.subr.mxu0 0.0
        %1468 = vmatpush1.msra.mxu0 0.0
        %1469 = vmatprep.subr.mxu0 0.0
        %1470 = vmatpush1.msra.mxu0 0.0
        %1471 = vmatprep.mubr.f32.mxu0 0.0
        %1472 = vmatmul.mubr.f32.gmra.mrb[0].mxu0 %v1343
        %v1473 = vpop.f32.mrb[0].mxu0
        %v1474 = vadd.f32 0.0, %v1473
        %v1475 = vpop.f32.mrb[0].mxu0
        %1476 = vmatprep.mubr.f32.mxu0 0.0
        %1477 = vmatmul.mubr.f32.gmra.mrb[0].mxu0 %v1344
        %v1478 = vpop.f32.mrb[0].mxu0
        %v1479 = vadd.f32 0.0, %v1478
        %v1480 = vpop.f32.mrb[0].mxu0
        %1481 = vmatprep.mubr.f32.mxu0 0.0
        %1482 = vmatmul.mubr.f32.gmra.mrb[0].mxu0 %v1345
        %v1483 = vpop.f32.mrb[0].mxu0
        %v1484 = vadd.f32 0.0, %v1483
        %v1485 = vpop.f32.mrb[0].mxu0
        %1486 = vmatprep.mubr.f32.mxu0 0.0
        %1487 = vmatmul.mubr.f32.gmra.mrb[0].mxu0 %v1346
        %v1488 = vpop.f32.mrb[0].mxu0
        %v1489 = vadd.f32 0.0, %v1488
        %v1490 = vpop.f32.mrb[0].mxu0
        %1491 = vmatprep.mubr.f32.mxu0 0.0
        %1492 = vmatmul.mubr.f32.gmra.mrb[0].mxu0 %v1347
        %v1493 = vpop.f32.mrb[0].mxu0
        %v1494 = vadd.f32 0.0, %v1493
        %v1495 = vpop.f32.mrb[0].mxu0
        %1496 = vmatprep.mubr.f32.mxu0 0.0
        %1497 = vmatmul.mubr.f32.gmra.mrb[0].mxu0 %v1348
        %v1498 = vpop.f32.mrb[0].mxu0
        %v1499 = vadd.f32 0.0, %v1498
        %v1500 = vpop.f32.mrb[0].mxu0
        %1501 = vmatprep.mubr.f32.mxu0 0.0
        %1502 = vmatmul.mubr.f32.gmra.mrb[0].mxu0 %v1349
        %v1503 = vpop.f32.mrb[0].mxu0
        %v1504 = vadd.f32 0.0, %v1503
        %v1505 = vpop.f32.mrb[0].mxu0
        %1506 = vmatprep.mubr.f32.mxu0 0.0
        %1507 = vmatmul.mubr.f32.gmra.mrb[0].mxu0 %v1350
        %v1508 = vpop.f32.mrb[0].mxu0
        %v1509 = vadd.f32 0.0, %v1508
        %v1510 = vpop.f32.mrb[0].mxu0
        %1511 = vmatprep.mubr.f32.mxu0 0.0
        %1512 = vmatmul.mubr.f32.gmra.mrb[0].mxu0 %v1351
        %v1513 = vpop.f32.mrb[0].mxu0
        %v1514 = vadd.f32 0.0, %v1513
        %v1515 = vpop.f32.mrb[0].mxu0
        %1516 = vmatprep.mubr.f32.mxu0 0.0
        %1517 = vmatmul.mubr.f32.gmra.mrb[0].mxu0 %v1352
        %v1518 = vpop.f32.mrb[0].mxu0
        %v1519 = vadd.f32 0.0, %v1518
        %v1520 = vpop.f32.mrb[0].mxu0
        %1521 = vmatprep.mubr.f32.mxu0 0.0
        %1522 = vmatmul.mubr.f32.gmra.mrb[0].mxu0 %v1353
        %v1523 = vpop.f32.mrb[0].mxu0
        %v1524 = vadd.f32 0.0, %v1523
        %v1525 = vpop.f32.mrb[0].mxu0
        %1526 = vmatprep.mubr.f32.mxu0 0.0
        %1527 = vmatmul.mubr.f32.gmra.mrb[0].mxu0 %v1354
        %v1528 = vpop.f32.mrb[0].mxu0
        %v1529 = vadd.f32 0.0, %v1528
        %v1530 = vpop.f32.mrb[0].mxu0
        %1531 = vmatprep.mubr.f32.mxu0 0.0
        %1532 = vmatmul.mubr.f32.gmra.mrb[0].mxu0 %v1355
        %v1533 = vpop.f32.mrb[0].mxu0
        %v1534 = vadd.f32 0.0, %v1533
        %v1535 = vpop.f32.mrb[0].mxu0
        %1536 = vmatprep.mubr.f32.mxu0 0.0
        %1537 = vmatmul.mubr.f32.gmra.mrb[0].mxu0 %v1356
        %v1538 = vpop.f32.mrb[0].mxu0
        %v1539 = vadd.f32 0.0, %v1538
        %v1540 = vpop.f32.mrb[0].mxu0
        %1541 = vmatprep.mubr.f32.mxu0 0.0
        %1542 = vmatmul.mubr.f32.gmra.mrb[0].mxu0 %v1357
        %v1543 = vpop.f32.mrb[0].mxu0
        %v1544 = vadd.f32 0.0, %v1543
        %v1545 = vpop.f32.mrb[0].mxu0
        %1546 = vmatprep.mubr.f32.mxu0 0.0
        %1547 = vmatmul.mubr.f32.gmra.mrb[0].mxu0 %v1358
        %v1548 = vpop.f32.mrb[0].mxu0
        %v1549 = vadd.f32 0.0, %v1548
        %v1550 = vpop.f32.mrb[0].mxu0
        %1551 = vdwg.mxu0
        %v1552 = vadd.f32 %v1310, %v1474
        %v1553 = vadd.f32 %v1311, %v1479
        %v1554 = vadd.f32 %v1312, %v1484
        %v1555 = vadd.f32 %v1313, %v1489
        %v1556 = vadd.f32 %v1314, %v1494
        %v1557 = vadd.f32 %v1315, %v1499
        %v1558 = vadd.f32 %v1316, %v1504
        %v1559 = vadd.f32 %v1317, %v1509
        %v1560 = vadd.f32 %v1318, %v1514
        %v1561 = vadd.f32 %v1319, %v1519
        %v1562 = vadd.f32 %v1320, %v1524
        %v1563 = vadd.f32 %v1321, %v1529
        %v1564 = vadd.f32 %v1322, %v1534
        %v1565 = vadd.f32 %v1323, %v1539
        %v1566 = vadd.f32 %v1324, %v1544
        %v1567 = vadd.f32 %v1325, %v1549
        %1568 = vst.msk [vmem:[#allocation2] sm:$0xff] %vm485, %v1552
        %1569 = vst.msk [vmem:[#allocation2 + $0x8] sm:$0xff] %vm485, %v1553
        %1570 = vst.msk [vmem:[#allocation2 + $0x10] sm:$0xff] %vm485, %v1554
        %1571 = vst.msk [vmem:[#allocation2 + $0x18] sm:$0xff] %vm485, %v1555
        %1572 = vst.msk [vmem:[#allocation2 + $0x20] sm:$0xff] %vm485, %v1556
        %1573 = vst.msk [vmem:[#allocation2 + $0x28] sm:$0xff] %vm485, %v1557
        %1574 = vst.msk [vmem:[#allocation2 + $0x30] sm:$0xff] %vm485, %v1558
        %1575 = vst.msk [vmem:[#allocation2 + $0x38] sm:$0xff] %vm485, %v1559
        %1576 = vst.msk [vmem:[#allocation2 + $0x40] sm:$0xff] %vm485, %v1560
        %1577 = vst.msk [vmem:[#allocation2 + $0x48] sm:$0xff] %vm485, %v1561
        %1578 = vst.msk [vmem:[#allocation2 + $0x50] sm:$0xff] %vm485, %v1562
        %1579 = vst.msk [vmem:[#allocation2 + $0x58] sm:$0xff] %vm485, %v1563
        %1580 = vst.msk [vmem:[#allocation2 + $0x60] sm:$0xff] %vm485, %v1564
        %1581 = vst.msk [vmem:[#allocation2 + $0x68] sm:$0xff] %vm485, %v1565
        %1582 = vst.msk [vmem:[#allocation2 + $0x70] sm:$0xff] %vm485, %v1566
        %1583 = vst.msk [vmem:[#allocation2 + $0x78] sm:$0xff] %vm485, %v1567
        %v1584 = vld [vmem:[#allocation2] sm:$0xff]
        %v1585 = vld [vmem:[#allocation2 + $0x8] sm:$0xff]
        %v1586 = vld [vmem:[#allocation2 + $0x10] sm:$0xff]
        %v1587 = vld [vmem:[#allocation2 + $0x18] sm:$0xff]
        %v1588 = vld [vmem:[#allocation2 + $0x20] sm:$0xff]
        %v1589 = vld [vmem:[#allocation2 + $0x28] sm:$0xff]
        %v1590 = vld [vmem:[#allocation2 + $0x30] sm:$0xff]
        %v1591 = vld [vmem:[#allocation2 + $0x38] sm:$0xff]
        %v1592 = vld [vmem:[#allocation2 + $0x40] sm:$0xff]
        %v1593 = vld [vmem:[#allocation2 + $0x48] sm:$0xff]
        %v1594 = vld [vmem:[#allocation2 + $0x50] sm:$0xff]
        %v1595 = vld [vmem:[#allocation2 + $0x58] sm:$0xff]
        %v1596 = vld [vmem:[#allocation2 + $0x60] sm:$0xff]
        %v1597 = vld [vmem:[#allocation2 + $0x68] sm:$0xff]
        %v1598 = vld [vmem:[#allocation2 + $0x70] sm:$0xff]
        %v1599 = vld [vmem:[#allocation2 + $0x78] sm:$0xff]
        %s1600 = scalar_lea.vmem %s376, 192 [#allocation3]
        %v1601 = vld [vmem:[%s1600] sm:$0xf]
        %v1602 = vld [vmem:[%s1600 + $0x4] sm:$0xf]
        %v1603 = vld [vmem:[%s1600 + $0x8] sm:$0xf]
        %v1604 = vld [vmem:[%s1600 + $0xc] sm:$0xf]
        %v1605 = vld [vmem:[%s1600 + $0x10] sm:$0xf]
        %v1606 = vld [vmem:[%s1600 + $0x14] sm:$0xf]
        %v1607 = vld [vmem:[%s1600 + $0x18] sm:$0xf]
        %v1608 = vld [vmem:[%s1600 + $0x1c] sm:$0xf]
        %v1609 = vld [vmem:[%s1600 + $0x20] sm:$0xf]
        %v1610 = vld [vmem:[%s1600 + $0x24] sm:$0xf]
        %v1611 = vld [vmem:[%s1600 + $0x28] sm:$0xf]
        %v1612 = vld [vmem:[%s1600 + $0x2c] sm:$0xf]
        %v1613 = vld [vmem:[%s1600 + $0x30] sm:$0xf]
        %v1614 = vld [vmem:[%s1600 + $0x34] sm:$0xf]
        %v1615 = vld [vmem:[%s1600 + $0x38] sm:$0xf]
        %v1616 = vld [vmem:[%s1600 + $0x3c] sm:$0xf]
        %v1617 = vunpack.c.l.bf16 %v1601
        %v1618 = vunpack.c.l.bf16 %v1602
        %v1619 = vunpack.c.l.bf16 %v1603
        %v1620 = vunpack.c.l.bf16 %v1604
        %v1621 = vunpack.c.l.bf16 %v1605
        %v1622 = vunpack.c.l.bf16 %v1606
        %v1623 = vunpack.c.l.bf16 %v1607
        %v1624 = vunpack.c.l.bf16 %v1608
        %v1625 = vunpack.c.l.bf16 %v1609
        %v1626 = vunpack.c.l.bf16 %v1610
        %v1627 = vunpack.c.l.bf16 %v1611
        %v1628 = vunpack.c.l.bf16 %v1612
        %v1629 = vunpack.c.l.bf16 %v1613
        %v1630 = vunpack.c.l.bf16 %v1614
        %v1631 = vunpack.c.l.bf16 %v1615
        %v1632 = vunpack.c.l.bf16 %v1616
        %1633 = vmatprep.subr.mxu0 0.0
        %1634 = vmatpush1.msra.mxu0 %v603
        %1635 = vmatprep.subr.mxu0 0.0
        %1636 = vmatpush1.msra.mxu0 %v609
        %1637 = vmatprep.subr.mxu0 0.0
        %1638 = vmatpush1.msra.mxu0 %v615
        %1639 = vmatprep.subr.mxu0 0.0
        %1640 = vmatpush1.msra.mxu0 %v621
        %1641 = vmatprep.subr.mxu0 0.0
        %1642 = vmatpush1.msra.mxu0 %v627
        %1643 = vmatprep.subr.mxu0 0.0
        %1644 = vmatpush1.msra.mxu0 %v633
        %1645 = vmatprep.subr.mxu0 0.0
        %1646 = vmatpush1.msra.mxu0 %v639
        %1647 = vmatprep.subr.mxu0 0.0
        %1648 = vmatpush1.msra.mxu0 %v645
        %1649 = vmatprep.subr.mxu0 0.0
        %1650 = vmatpush1.msra.mxu0 %v651
        %1651 = vmatprep.subr.mxu0 0.0
        %1652 = vmatpush1.msra.mxu0 %v657
        %1653 = vmatprep.subr.mxu0 0.0
        %1654 = vmatpush1.msra.mxu0 %v663
        %1655 = vmatprep.subr.mxu0 0.0
        %1656 = vmatpush1.msra.mxu0 %v669
        %1657 = vmatprep.subr.mxu0 0.0
        %1658 = vmatpush1.msra.mxu0 %v675
        %1659 = vmatprep.subr.mxu0 0.0
        %1660 = vmatpush1.msra.mxu0 %v681
        %1661 = vmatprep.subr.mxu0 0.0
        %1662 = vmatpush1.msra.mxu0 %v687
        %1663 = vmatprep.subr.mxu0 0.0
        %1664 = vmatpush1.msra.mxu0 %v693
        %1665 = vmatprep.subr.mxu0 0.0
        %1666 = vmatpush1.msra.mxu0 0.0
        %1667 = vmatprep.subr.mxu0 0.0
        %1668 = vmatpush1.msra.mxu0 0.0
        %1669 = vmatprep.subr.mxu0 0.0
        %1670 = vmatpush1.msra.mxu0 0.0
        %1671 = vmatprep.subr.mxu0 0.0
        %1672 = vmatpush1.msra.mxu0 0.0
        %1673 = vmatprep.subr.mxu0 0.0
        %1674 = vmatpush1.msra.mxu0 0.0
        %1675 = vmatprep.subr.mxu0 0.0
        %1676 = vmatpush1.msra.mxu0 0.0
        %1677 = vmatprep.subr.mxu0 0.0
        %1678 = vmatpush1.msra.mxu0 0.0
        %1679 = vmatprep.subr.mxu0 0.0
        %1680 = vmatpush1.msra.mxu0 0.0
        %1681 = vmatprep.subr.mxu0 0.0
        %1682 = vmatpush1.msra.mxu0 0.0
        %1683 = vmatprep.subr.mxu0 0.0
        %1684 = vmatpush1.msra.mxu0 0.0
        %1685 = vmatprep.subr.mxu0 0.0
        %1686 = vmatpush1.msra.mxu0 0.0
        %1687 = vmatprep.subr.mxu0 0.0
        %1688 = vmatpush1.msra.mxu0 0.0
        %1689 = vmatprep.subr.mxu0 0.0
        %1690 = vmatpush1.msra.mxu0 0.0
        %1691 = vmatprep.subr.mxu0 0.0
        %1692 = vmatpush1.msra.mxu0 0.0
        %1693 = vmatprep.subr.mxu0 0.0
        %1694 = vmatpush1.msra.mxu0 0.0
        %1695 = vmatprep.subr.mxu0 0.0
        %1696 = vmatpush1.msra.mxu0 0.0
        %1697 = vmatprep.mubr.f32.mxu0 0.0
        %1698 = vmatmul.mubr.f32.gmra.mrb[0].mxu0 %v1617
        %v1699 = vpop.f32.mrb[0].mxu0
        %v1700 = vadd.f32 0.0, %v1699
        %v1701 = vpop.f32.mrb[0].mxu0
        %1702 = vmatprep.mubr.f32.mxu0 0.0
        %1703 = vmatmul.mubr.f32.gmra.mrb[0].mxu0 %v1618
        %v1704 = vpop.f32.mrb[0].mxu0
        %v1705 = vadd.f32 0.0, %v1704
        %v1706 = vpop.f32.mrb[0].mxu0
        %1707 = vmatprep.mubr.f32.mxu0 0.0
        %1708 = vmatmul.mubr.f32.gmra.mrb[0].mxu0 %v1619
        %v1709 = vpop.f32.mrb[0].mxu0
        %v1710 = vadd.f32 0.0, %v1709
        %v1711 = vpop.f32.mrb[0].mxu0
        %1712 = vmatprep.mubr.f32.mxu0 0.0
        %1713 = vmatmul.mubr.f32.gmra.mrb[0].mxu0 %v1620
        %v1714 = vpop.f32.mrb[0].mxu0
        %v1715 = vadd.f32 0.0, %v1714
        %v1716 = vpop.f32.mrb[0].mxu0
        %1717 = vmatprep.mubr.f32.mxu0 0.0
        %1718 = vmatmul.mubr.f32.gmra.mrb[0].mxu0 %v1621
        %v1719 = vpop.f32.mrb[0].mxu0
        %v1720 = vadd.f32 0.0, %v1719
        %v1721 = vpop.f32.mrb[0].mxu0
        %1722 = vmatprep.mubr.f32.mxu0 0.0
        %1723 = vmatmul.mubr.f32.gmra.mrb[0].mxu0 %v1622
        %v1724 = vpop.f32.mrb[0].mxu0
        %v1725 = vadd.f32 0.0, %v1724
        %v1726 = vpop.f32.mrb[0].mxu0
        %1727 = vmatprep.mubr.f32.mxu0 0.0
        %1728 = vmatmul.mubr.f32.gmra.mrb[0].mxu0 %v1623
        %v1729 = vpop.f32.mrb[0].mxu0
        %v1730 = vadd.f32 0.0, %v1729
        %v1731 = vpop.f32.mrb[0].mxu0
        %1732 = vmatprep.mubr.f32.mxu0 0.0
        %1733 = vmatmul.mubr.f32.gmra.mrb[0].mxu0 %v1624
        %v1734 = vpop.f32.mrb[0].mxu0
        %v1735 = vadd.f32 0.0, %v1734
        %v1736 = vpop.f32.mrb[0].mxu0
        %1737 = vmatprep.mubr.f32.mxu0 0.0
        %1738 = vmatmul.mubr.f32.gmra.mrb[0].mxu0 %v1625
        %v1739 = vpop.f32.mrb[0].mxu0
        %v1740 = vadd.f32 0.0, %v1739
        %v1741 = vpop.f32.mrb[0].mxu0
        %1742 = vmatprep.mubr.f32.mxu0 0.0
        %1743 = vmatmul.mubr.f32.gmra.mrb[0].mxu0 %v1626
        %v1744 = vpop.f32.mrb[0].mxu0
        %v1745 = vadd.f32 0.0, %v1744
        %v1746 = vpop.f32.mrb[0].mxu0
        %1747 = vmatprep.mubr.f32.mxu0 0.0
        %1748 = vmatmul.mubr.f32.gmra.mrb[0].mxu0 %v1627
        %v1749 = vpop.f32.mrb[0].mxu0
        %v1750 = vadd.f32 0.0, %v1749
        %v1751 = vpop.f32.mrb[0].mxu0
        %1752 = vmatprep.mubr.f32.mxu0 0.0
        %1753 = vmatmul.mubr.f32.gmra.mrb[0].mxu0 %v1628
        %v1754 = vpop.f32.mrb[0].mxu0
        %v1755 = vadd.f32 0.0, %v1754
        %v1756 = vpop.f32.mrb[0].mxu0
        %1757 = vmatprep.mubr.f32.mxu0 0.0
        %1758 = vmatmul.mubr.f32.gmra.mrb[0].mxu0 %v1629
        %v1759 = vpop.f32.mrb[0].mxu0
        %v1760 = vadd.f32 0.0, %v1759
        %v1761 = vpop.f32.mrb[0].mxu0
        %1762 = vmatprep.mubr.f32.mxu0 0.0
        %1763 = vmatmul.mubr.f32.gmra.mrb[0].mxu0 %v1630
        %v1764 = vpop.f32.mrb[0].mxu0
        %v1765 = vadd.f32 0.0, %v1764
        %v1766 = vpop.f32.mrb[0].mxu0
        %1767 = vmatprep.mubr.f32.mxu0 0.0
        %1768 = vmatmul.mubr.f32.gmra.mrb[0].mxu0 %v1631
        %v1769 = vpop.f32.mrb[0].mxu0
        %v1770 = vadd.f32 0.0, %v1769
        %v1771 = vpop.f32.mrb[0].mxu0
        %1772 = vmatprep.mubr.f32.mxu0 0.0
        %1773 = vmatmul.mubr.f32.gmra.mrb[0].mxu0 %v1632
        %v1774 = vpop.f32.mrb[0].mxu0
        %v1775 = vadd.f32 0.0, %v1774
        %v1776 = vpop.f32.mrb[0].mxu0
        %1777 = vdwg.mxu0
        %v1778 = vadd.f32 %v1584, %v1700
        %v1779 = vadd.f32 %v1585, %v1705
        %v1780 = vadd.f32 %v1586, %v1710
        %v1781 = vadd.f32 %v1587, %v1715
        %v1782 = vadd.f32 %v1588, %v1720
        %v1783 = vadd.f32 %v1589, %v1725
        %v1784 = vadd.f32 %v1590, %v1730
        %v1785 = vadd.f32 %v1591, %v1735
        %v1786 = vadd.f32 %v1592, %v1740
        %v1787 = vadd.f32 %v1593, %v1745
        %v1788 = vadd.f32 %v1594, %v1750
        %v1789 = vadd.f32 %v1595, %v1755
        %v1790 = vadd.f32 %v1596, %v1760
        %v1791 = vadd.f32 %v1597, %v1765
        %v1792 = vadd.f32 %v1598, %v1770
        %v1793 = vadd.f32 %v1599, %v1775
        %1794 = vst.msk [vmem:[#allocation2] sm:$0xff] %vm485, %v1778
        %1795 = vst.msk [vmem:[#allocation2 + $0x8] sm:$0xff] %vm485, %v1779
        %1796 = vst.msk [vmem:[#allocation2 + $0x10] sm:$0xff] %vm485, %v1780
        %1797 = vst.msk [vmem:[#allocation2 + $0x18] sm:$0xff] %vm485, %v1781
        %1798 = vst.msk [vmem:[#allocation2 + $0x20] sm:$0xff] %vm485, %v1782
        %1799 = vst.msk [vmem:[#allocation2 + $0x28] sm:$0xff] %vm485, %v1783
        %1800 = vst.msk [vmem:[#allocation2 + $0x30] sm:$0xff] %vm485, %v1784
        %1801 = vst.msk [vmem:[#allocation2 + $0x38] sm:$0xff] %vm485, %v1785
        %1802 = vst.msk [vmem:[#allocation2 + $0x40] sm:$0xff] %vm485, %v1786
        %1803 = vst.msk [vmem:[#allocation2 + $0x48] sm:$0xff] %vm485, %v1787
        %1804 = vst.msk [vmem:[#allocation2 + $0x50] sm:$0xff] %vm485, %v1788
        %1805 = vst.msk [vmem:[#allocation2 + $0x58] sm:$0xff] %vm485, %v1789
        %1806 = vst.msk [vmem:[#allocation2 + $0x60] sm:$0xff] %vm485, %v1790
        %1807 = vst.msk [vmem:[#allocation2 + $0x68] sm:$0xff] %vm485, %v1791
        %1808 = vst.msk [vmem:[#allocation2 + $0x70] sm:$0xff] %vm485, %v1792
        %1809 = vst.msk [vmem:[#allocation2 + $0x78] sm:$0xff] %vm485, %v1793
        %p1810 = scmp.eq.s32.totalorder %s28, 1
        // Predicated region
        $region69: #{tpu_custom_call.1} parent=55 // pred_check
          %p1811 = pneg %p1810
        $region70: #{tpu_custom_call.1} parent=55 // pred_check_branch
          %1813 = sbr.rel (%p1811) target = $region72
        $region71: #{tpu_custom_call.1} parent=55 // pred_region
          %v1814 = vld [vmem:[#allocation2] sm:$0xff]
          %v1815 = vld [vmem:[#allocation2 + $0x8] sm:$0xff]
          %v1816 = vld [vmem:[#allocation2 + $0x10] sm:$0xff]
          %v1817 = vld [vmem:[#allocation2 + $0x18] sm:$0xff]
          %v1818 = vld [vmem:[#allocation2 + $0x20] sm:$0xff]
          %v1819 = vld [vmem:[#allocation2 + $0x28] sm:$0xff]
          %v1820 = vld [vmem:[#allocation2 + $0x30] sm:$0xff]
          %v1821 = vld [vmem:[#allocation2 + $0x38] sm:$0xff]
          %v1822 = vld [vmem:[#allocation2 + $0x40] sm:$0xff]
          %v1823 = vld [vmem:[#allocation2 + $0x48] sm:$0xff]
          %v1824 = vld [vmem:[#allocation2 + $0x50] sm:$0xff]
          %v1825 = vld [vmem:[#allocation2 + $0x58] sm:$0xff]
          %v1826 = vld [vmem:[#allocation2 + $0x60] sm:$0xff]
          %v1827 = vld [vmem:[#allocation2 + $0x68] sm:$0xff]
          %v1828 = vld [vmem:[#allocation2 + $0x70] sm:$0xff]
          %v1829 = vld [vmem:[#allocation2 + $0x78] sm:$0xff]
          %v1830 = vld [vmem:[%s5] sm:$0x1]
          %v1831 = vld [vmem:[%s6] sm:$0x1]
          %v1832 = vsel %vm485, %v1814, 0.0
          %1833 = vadd.xlane.f32.xlu0 %v1832
          %v1834 = vpop.xlane.xlu0 %1833
          %v1835 = vsel %vm485, %v1815, 0.0
          %1836 = vadd.xlane.f32.xlu0 %v1835
          %v1837 = vpop.xlane.xlu0 %1836
          %v1838 = vsel %vm485, %v1816, 0.0
          %1839 = vadd.xlane.f32.xlu0 %v1838
          %v1840 = vpop.xlane.xlu0 %1839
          %v1841 = vsel %vm485, %v1817, 0.0
          %1842 = vadd.xlane.f32.xlu0 %v1841
          %v1843 = vpop.xlane.xlu0 %1842
          %v1844 = vsel %vm485, %v1818, 0.0
          %1845 = vadd.xlane.f32.xlu0 %v1844
          %v1846 = vpop.xlane.xlu0 %1845
          %v1847 = vsel %vm485, %v1819, 0.0
          %1848 = vadd.xlane.f32.xlu0 %v1847
          %v1849 = vpop.xlane.xlu0 %1848
          %v1850 = vsel %vm485, %v1820, 0.0
          %1851 = vadd.xlane.f32.xlu0 %v1850
          %v1852 = vpop.xlane.xlu0 %1851
          %v1853 = vsel %vm485, %v1821, 0.0
          %1854 = vadd.xlane.f32.xlu0 %v1853
          %v1855 = vpop.xlane.xlu0 %1854
          %v1856 = vsel %vm485, %v1822, 0.0
          %1857 = vadd.xlane.f32.xlu0 %v1856
          %v1858 = vpop.xlane.xlu0 %1857
          %v1859 = vsel %vm485, %v1823, 0.0
          %1860 = vadd.xlane.f32.xlu0 %v1859
          %v1861 = vpop.xlane.xlu0 %1860
          %v1862 = vsel %vm485, %v1824, 0.0
          %1863 = vadd.xlane.f32.xlu0 %v1862
          %v1864 = vpop.xlane.xlu0 %1863
          %v1865 = vsel %vm485, %v1825, 0.0
          %1866 = vadd.xlane.f32.xlu0 %v1865
          %v1867 = vpop.xlane.xlu0 %1866
          %v1868 = vsel %vm485, %v1826, 0.0
          %1869 = vadd.xlane.f32.xlu0 %v1868
          %v1870 = vpop.xlane.xlu0 %1869
          %v1871 = vsel %vm485, %v1827, 0.0
          %1872 = vadd.xlane.f32.xlu0 %v1871
          %v1873 = vpop.xlane.xlu0 %1872
          %v1874 = vsel %vm485, %v1828, 0.0
          %1875 = vadd.xlane.f32.xlu0 %v1874
          %v1876 = vpop.xlane.xlu0 %1875
          %v1877 = vsel %vm485, %v1829, 0.0
          %1878 = vadd.xlane.f32.xlu0 %v1877
          %v1879 = vpop.xlane.xlu0 %1878
          %v1880 = vrcp.pop 32.0
          %v1881 = vmul.f32 %v1834, %v1880
          %v1882 = vmul.f32 %v1837, %v1880
          %v1883 = vmul.f32 %v1840, %v1880
          %v1884 = vmul.f32 %v1843, %v1880
          %v1885 = vmul.f32 %v1846, %v1880
          %v1886 = vmul.f32 %v1849, %v1880
          %v1887 = vmul.f32 %v1852, %v1880
          %v1888 = vmul.f32 %v1855, %v1880
          %v1889 = vmul.f32 %v1858, %v1880
          %v1890 = vmul.f32 %v1861, %v1880
          %v1891 = vmul.f32 %v1864, %v1880
          %v1892 = vmul.f32 %v1867, %v1880
          %v1893 = vmul.f32 %v1870, %v1880
          %v1894 = vmul.f32 %v1873, %v1880
          %v1895 = vmul.f32 %v1876, %v1880
          %v1896 = vmul.f32 %v1879, %v1880
          %v1897 = vsub.f32 %v1814, %v1881
          %v1898 = vsub.f32 %v1815, %v1882
          %v1899 = vsub.f32 %v1816, %v1883
          %v1900 = vsub.f32 %v1817, %v1884
          %v1901 = vsub.f32 %v1818, %v1885
          %v1902 = vsub.f32 %v1819, %v1886
          %v1903 = vsub.f32 %v1820, %v1887
          %v1904 = vsub.f32 %v1821, %v1888
          %v1905 = vsub.f32 %v1822, %v1889
          %v1906 = vsub.f32 %v1823, %v1890
          %v1907 = vsub.f32 %v1824, %v1891
          %v1908 = vsub.f32 %v1825, %v1892
          %v1909 = vsub.f32 %v1826, %v1893
          %v1910 = vsub.f32 %v1827, %v1894
          %v1911 = vsub.f32 %v1828, %v1895
          %v1912 = vsub.f32 %v1829, %v1896
          %v1913 = vmul.f32 %v1897, %v1897
          %v1914 = vmul.f32 %v1898, %v1898
          %v1915 = vmul.f32 %v1899, %v1899
          %v1916 = vmul.f32 %v1900, %v1900
          %v1917 = vmul.f32 %v1901, %v1901
          %v1918 = vmul.f32 %v1902, %v1902
          %v1919 = vmul.f32 %v1903, %v1903
          %v1920 = vmul.f32 %v1904, %v1904
          %v1921 = vmul.f32 %v1905, %v1905
          %v1922 = vmul.f32 %v1906, %v1906
          %v1923 = vmul.f32 %v1907, %v1907
          %v1924 = vmul.f32 %v1908, %v1908
          %v1925 = vmul.f32 %v1909, %v1909
          %v1926 = vmul.f32 %v1910, %v1910
          %v1927 = vmul.f32 %v1911, %v1911
          %v1928 = vmul.f32 %v1912, %v1912
          %v1929 = vsel %vm485, %v1913, 0.0
          %1930 = vadd.xlane.f32.xlu0 %v1929
          %v1931 = vpop.xlane.xlu0 %1930
          %v1932 = vsel %vm485, %v1914, 0.0
          %1933 = vadd.xlane.f32.xlu0 %v1932
          %v1934 = vpop.xlane.xlu0 %1933
          %v1935 = vsel %vm485, %v1915, 0.0
          %1936 = vadd.xlane.f32.xlu0 %v1935
          %v1937 = vpop.xlane.xlu0 %1936
          %v1938 = vsel %vm485, %v1916, 0.0
          %1939 = vadd.xlane.f32.xlu0 %v1938
          %v1940 = vpop.xlane.xlu0 %1939
          %v1941 = vsel %vm485, %v1917, 0.0
          %1942 = vadd.xlane.f32.xlu0 %v1941
          %v1943 = vpop.xlane.xlu0 %1942
          %v1944 = vsel %vm485, %v1918, 0.0
          %1945 = vadd.xlane.f32.xlu0 %v1944
          %v1946 = vpop.xlane.xlu0 %1945
          %v1947 = vsel %vm485, %v1919, 0.0
          %1948 = vadd.xlane.f32.xlu0 %v1947
          %v1949 = vpop.xlane.xlu0 %1948
          %v1950 = vsel %vm485, %v1920, 0.0
          %1951 = vadd.xlane.f32.xlu0 %v1950
          %v1952 = vpop.xlane.xlu0 %1951
          %v1953 = vsel %vm485, %v1921, 0.0
          %1954 = vadd.xlane.f32.xlu0 %v1953
          %v1955 = vpop.xlane.xlu0 %1954
          %v1956 = vsel %vm485, %v1922, 0.0
          %1957 = vadd.xlane.f32.xlu0 %v1956
          %v1958 = vpop.xlane.xlu0 %1957
          %v1959 = vsel %vm485, %v1923, 0.0
          %1960 = vadd.xlane.f32.xlu0 %v1959
          %v1961 = vpop.xlane.xlu0 %1960
          %v1962 = vsel %vm485, %v1924, 0.0
          %1963 = vadd.xlane.f32.xlu0 %v1962
          %v1964 = vpop.xlane.xlu0 %1963
          %v1965 = vsel %vm485, %v1925, 0.0
          %1966 = vadd.xlane.f32.xlu0 %v1965
          %v1967 = vpop.xlane.xlu0 %1966
          %v1968 = vsel %vm485, %v1926, 0.0
          %1969 = vadd.xlane.f32.xlu0 %v1968
          %v1970 = vpop.xlane.xlu0 %1969
          %v1971 = vsel %vm485, %v1927, 0.0
          %1972 = vadd.xlane.f32.xlu0 %v1971
          %v1973 = vpop.xlane.xlu0 %1972
          %v1974 = vsel %vm485, %v1928, 0.0
          %1975 = vadd.xlane.f32.xlu0 %v1974
          %v1976 = vpop.xlane.xlu0 %1975
          %v1977 = vmul.f32 %v1931, %v1880
          %v1978 = vmul.f32 %v1934, %v1880
          %v1979 = vmul.f32 %v1937, %v1880
          %v1980 = vmul.f32 %v1940, %v1880
          %v1981 = vmul.f32 %v1943, %v1880
          %v1982 = vmul.f32 %v1946, %v1880
          %v1983 = vmul.f32 %v1949, %v1880
          %v1984 = vmul.f32 %v1952, %v1880
          %v1985 = vmul.f32 %v1955, %v1880
          %v1986 = vmul.f32 %v1958, %v1880
          %v1987 = vmul.f32 %v1961, %v1880
          %v1988 = vmul.f32 %v1964, %v1880
          %v1989 = vmul.f32 %v1967, %v1880
          %v1990 = vmul.f32 %v1970, %v1880
          %v1991 = vmul.f32 %v1973, %v1880
          %v1992 = vmul.f32 %v1976, %v1880
          %v1993 = vadd.f32 %v1977, 1e-05
          %v1994 = vadd.f32 %v1978, 1e-05
          %v1995 = vadd.f32 %v1979, 1e-05
          %v1996 = vadd.f32 %v1980, 1e-05
          %v1997 = vadd.f32 %v1981, 1e-05
          %v1998 = vadd.f32 %v1982, 1e-05
          %v1999 = vadd.f32 %v1983, 1e-05
          %v2000 = vadd.f32 %v1984, 1e-05
          %v2001 = vadd.f32 %v1985, 1e-05
          %v2002 = vadd.f32 %v1986, 1e-05
          %v2003 = vadd.f32 %v1987, 1e-05
          %v2004 = vadd.f32 %v1988, 1e-05
          %v2005 = vadd.f32 %v1989, 1e-05
          %v2006 = vadd.f32 %v1990, 1e-05
          %v2007 = vadd.f32 %v1991, 1e-05
          %v2008 = vadd.f32 %v1992, 1e-05
          %v2009 = vrsqrt.pop %v1993
          %v2010 = vrsqrt.pop %v1994
          %v2011 = vrsqrt.pop %v1995
          %v2012 = vrsqrt.pop %v1996
          %v2013 = vrsqrt.pop %v1997
          %v2014 = vrsqrt.pop %v1998
          %v2015 = vrsqrt.pop %v1999
          %v2016 = vrsqrt.pop %v2000
          %v2017 = vrsqrt.pop %v2001
          %v2018 = vrsqrt.pop %v2002
          %v2019 = vrsqrt.pop %v2003
          %v2020 = vrsqrt.pop %v2004
          %v2021 = vrsqrt.pop %v2005
          %v2022 = vrsqrt.pop %v2006
          %v2023 = vrsqrt.pop %v2007
          %v2024 = vrsqrt.pop %v2008
          %v2025 = vmul.f32 %v1897, %v2009
          %v2026 = vmul.f32 %v1898, %v2010
          %v2027 = vmul.f32 %v1899, %v2011
          %v2028 = vmul.f32 %v1900, %v2012
          %v2029 = vmul.f32 %v1901, %v2013
          %v2030 = vmul.f32 %v1902, %v2014
          %v2031 = vmul.f32 %v1903, %v2015
          %v2032 = vmul.f32 %v1904, %v2016
          %v2033 = vmul.f32 %v1905, %v2017
          %v2034 = vmul.f32 %v1906, %v2018
          %v2035 = vmul.f32 %v1907, %v2019
          %v2036 = vmul.f32 %v1908, %v2020
          %v2037 = vmul.f32 %v1909, %v2021
          %v2038 = vmul.f32 %v1910, %v2022
          %v2039 = vmul.f32 %v1911, %v2023
          %v2040 = vmul.f32 %v1912, %v2024
          %v2042 = vlaneseq
          %v2043 = vshrl.u32 %v2042, 7
          %v2044 = vsub.s32 0, %v2043
          %v2045 = vrot.slane %v1830, %v2044
          %v2047 = vmul.f32 %v2025, %v2045
          %v2048 = vmul.f32 %v2026, %v2045
          %v2049 = vmul.f32 %v2027, %v2045
          %v2050 = vmul.f32 %v2028, %v2045
          %v2051 = vmul.f32 %v2029, %v2045
          %v2052 = vmul.f32 %v2030, %v2045
          %v2053 = vmul.f32 %v2031, %v2045
          %v2054 = vmul.f32 %v2032, %v2045
          %v2055 = vmul.f32 %v2033, %v2045
          %v2056 = vmul.f32 %v2034, %v2045
          %v2057 = vmul.f32 %v2035, %v2045
          %v2058 = vmul.f32 %v2036, %v2045
          %v2059 = vmul.f32 %v2037, %v2045
          %v2060 = vmul.f32 %v2038, %v2045
          %v2061 = vmul.f32 %v2039, %v2045
          %v2062 = vmul.f32 %v2040, %v2045
          %v2064 = vlaneseq
          %v2065 = vshrl.u32 %v2064, 7
          %v2066 = vsub.s32 0, %v2065
          %v2067 = vrot.slane %v1831, %v2066
          %v2069 = vadd.f32 %v2047, %v2067
          %v2070 = vadd.f32 %v2048, %v2067
          %v2071 = vadd.f32 %v2049, %v2067
          %v2072 = vadd.f32 %v2050, %v2067
          %v2073 = vadd.f32 %v2051, %v2067
          %v2074 = vadd.f32 %v2052, %v2067
          %v2075 = vadd.f32 %v2053, %v2067
          %v2076 = vadd.f32 %v2054, %v2067
          %v2077 = vadd.f32 %v2055, %v2067
          %v2078 = vadd.f32 %v2056, %v2067
          %v2079 = vadd.f32 %v2057, %v2067
          %v2080 = vadd.f32 %v2058, %v2067
          %v2081 = vadd.f32 %v2059, %v2067
          %v2082 = vadd.f32 %v2060, %v2067
          %v2083 = vadd.f32 %v2061, %v2067
          %v2084 = vadd.f32 %v2062, %v2067
          %v2085 = vmax.f32 %v2069, 0.0
          %v2086 = vmax.f32 %v2070, 0.0
          %v2087 = vmax.f32 %v2071, 0.0
          %v2088 = vmax.f32 %v2072, 0.0
          %v2089 = vmax.f32 %v2073, 0.0
          %v2090 = vmax.f32 %v2074, 0.0
          %v2091 = vmax.f32 %v2075, 0.0
          %v2092 = vmax.f32 %v2076, 0.0
          %v2093 = vmax.f32 %v2077, 0.0
          %v2094 = vmax.f32 %v2078, 0.0
          %v2095 = vmax.f32 %v2079, 0.0
          %v2096 = vmax.f32 %v2080, 0.0
          %v2097 = vmax.f32 %v2081, 0.0
          %v2098 = vmax.f32 %v2082, 0.0
          %v2099 = vmax.f32 %v2083, 0.0
          %v2100 = vmax.f32 %v2084, 0.0
          %v2101 = vld [vmem:[%s4] sm:$0xff]
          %v2102 = vld [vmem:[%s4 + $0x8] sm:$0xff]
          %v2103 = vld [vmem:[%s4 + $0x10] sm:$0xff]
          %v2104 = vld [vmem:[%s4 + $0x18] sm:$0xff]
          %v2106 = vsel %vm485, %v2085, 0
          %v2109 = vsel %vm485, %v2086, 0
          %v2112 = vsel %vm485, %v2087, 0
          %v2115 = vsel %vm485, %v2088, 0
          %v2118 = vsel %vm485, %v2089, 0
          %v2121 = vsel %vm485, %v2090, 0
          %v2124 = vsel %vm485, %v2091, 0
          %v2127 = vsel %vm485, %v2092, 0
          %v2130 = vsel %vm485, %v2093, 0
          %v2133 = vsel %vm485, %v2094, 0
          %v2136 = vsel %vm485, %v2095, 0
          %v2139 = vsel %vm485, %v2096, 0
          %v2142 = vsel %vm485, %v2097, 0
          %v2145 = vsel %vm485, %v2098, 0
          %v2148 = vsel %vm485, %v2099, 0
          %v2151 = vsel %vm485, %v2100, 0
          %2153 = vmatprep.subr.mxu0 0.0
          %2154 = vmatpush1.msra.mxu0 %v2101
          %2155 = vmatprep.subr.mxu0 0.0
          %2156 = vmatpush1.msra.mxu0 %v2102
          %2157 = vmatprep.subr.mxu0 0.0
          %2158 = vmatpush1.msra.mxu0 %v2103
          %2159 = vmatprep.subr.mxu0 0.0
          %2160 = vmatpush1.msra.mxu0 %v2104
          %2161 = vmatprep.subr.mxu0 0.0
          %2162 = vmatpush1.msra.mxu0 0.0
          %2163 = vmatprep.subr.mxu0 0.0
          %2164 = vmatpush1.msra.mxu0 0.0
          %2165 = vmatprep.subr.mxu0 0.0
          %2166 = vmatpush1.msra.mxu0 0.0
          %2167 = vmatprep.subr.mxu0 0.0
          %2168 = vmatpush1.msra.mxu0 0.0
          %2169 = vmatprep.subr.mxu0 0.0
          %2170 = vmatpush1.msra.mxu0 0.0
          %2171 = vmatprep.subr.mxu0 0.0
          %2172 = vmatpush1.msra.mxu0 0.0
          %2173 = vmatprep.subr.mxu0 0.0
          %2174 = vmatpush1.msra.mxu0 0.0
          %2175 = vmatprep.subr.mxu0 0.0
          %2176 = vmatpush1.msra.mxu0 0.0
          %2177 = vmatprep.subr.mxu0 0.0
          %2178 = vmatpush1.msra.mxu0 0.0
          %2179 = vmatprep.subr.mxu0 0.0
          %2180 = vmatpush1.msra.mxu0 0.0
          %2181 = vmatprep.subr.mxu0 0.0
          %2182 = vmatpush1.msra.mxu0 0.0
          %2183 = vmatprep.subr.mxu0 0.0
          %2184 = vmatpush1.msra.mxu0 0.0
          %2185 = vmatprep.subr.mxu0 0.0
          %2186 = vmatpush1.msra.mxu0 0.0
          %2187 = vmatprep.subr.mxu0 0.0
          %2188 = vmatpush1.msra.mxu0 0.0
          %2189 = vmatprep.subr.mxu0 0.0
          %2190 = vmatpush1.msra.mxu0 0.0
          %2191 = vmatprep.subr.mxu0 0.0
          %2192 = vmatpush1.msra.mxu0 0.0
          %2193 = vmatprep.subr.mxu0 0.0
          %2194 = vmatpush1.msra.mxu0 0.0
          %2195 = vmatprep.subr.mxu0 0.0
          %2196 = vmatpush1.msra.mxu0 0.0
          %2197 = vmatprep.subr.mxu0 0.0
          %2198 = vmatpush1.msra.mxu0 0.0
          %2199 = vmatprep.subr.mxu0 0.0
          %2200 = vmatpush1.msra.mxu0 0.0
          %2201 = vmatprep.subr.mxu0 0.0
          %2202 = vmatpush1.msra.mxu0 0.0
          %2203 = vmatprep.subr.mxu0 0.0
          %2204 = vmatpush1.msra.mxu0 0.0
          %2205 = vmatprep.subr.mxu0 0.0
          %2206 = vmatpush1.msra.mxu0 0.0
          %2207 = vmatprep.subr.mxu0 0.0
          %2208 = vmatpush1.msra.mxu0 0.0
          %2209 = vmatprep.subr.mxu0 0.0
          %2210 = vmatpush1.msra.mxu0 0.0
          %2211 = vmatprep.subr.mxu0 0.0
          %2212 = vmatpush1.msra.mxu0 0.0
          %2213 = vmatprep.subr.mxu0 0.0
          %2214 = vmatpush1.msra.mxu0 0.0
          %2215 = vmatprep.subr.mxu0 0.0
          %2216 = vmatpush1.msra.mxu0 0.0
          %2217 = vmatprep.mubr.f32.mxu0 0.0
          %2218 = vmatmul.mubr.f32.gmra.mrb[0].mxu0 %v2106
          %v2219 = vpop.f32.mrb[0].mxu0
          %v2220 = vadd.f32 0.0, %v2219
          %v2221 = vpop.f32.mrb[0].mxu0
          %2222 = vmatprep.mubr.f32.mxu0 0.0
          %2223 = vmatmul.mubr.f32.gmra.mrb[0].mxu0 %v2109
          %v2224 = vpop.f32.mrb[0].mxu0
          %v2225 = vadd.f32 0.0, %v2224
          %v2226 = vpop.f32.mrb[0].mxu0
          %2227 = vmatprep.mubr.f32.mxu0 0.0
          %2228 = vmatmul.mubr.f32.gmra.mrb[0].mxu0 %v2112
          %v2229 = vpop.f32.mrb[0].mxu0
          %v2230 = vadd.f32 0.0, %v2229
          %v2231 = vpop.f32.mrb[0].mxu0
          %2232 = vmatprep.mubr.f32.mxu0 0.0
          %2233 = vmatmul.mubr.f32.gmra.mrb[0].mxu0 %v2115
          %v2234 = vpop.f32.mrb[0].mxu0
          %v2235 = vadd.f32 0.0, %v2234
          %v2236 = vpop.f32.mrb[0].mxu0
          %2237 = vmatprep.mubr.f32.mxu0 0.0
          %2238 = vmatmul.mubr.f32.gmra.mrb[0].mxu0 %v2118
          %v2239 = vpop.f32.mrb[0].mxu0
          %v2240 = vadd.f32 0.0, %v2239
          %v2241 = vpop.f32.mrb[0].mxu0
          %2242 = vmatprep.mubr.f32.mxu0 0.0
          %2243 = vmatmul.mubr.f32.gmra.mrb[0].mxu0 %v2121
          %v2244 = vpop.f32.mrb[0].mxu0
          %v2245 = vadd.f32 0.0, %v2244
          %v2246 = vpop.f32.mrb[0].mxu0
          %2247 = vmatprep.mubr.f32.mxu0 0.0
          %2248 = vmatmul.mubr.f32.gmra.mrb[0].mxu0 %v2124
          %v2249 = vpop.f32.mrb[0].mxu0
          %v2250 = vadd.f32 0.0, %v2249
          %v2251 = vpop.f32.mrb[0].mxu0
          %2252 = vmatprep.mubr.f32.mxu0 0.0
          %2253 = vmatmul.mubr.f32.gmra.mrb[0].mxu0 %v2127
          %v2254 = vpop.f32.mrb[0].mxu0
          %v2255 = vadd.f32 0.0, %v2254
          %v2256 = vpop.f32.mrb[0].mxu0
          %2257 = vmatprep.mubr.f32.mxu0 0.0
          %2258 = vmatmul.mubr.f32.gmra.mrb[0].mxu0 %v2130
          %v2259 = vpop.f32.mrb[0].mxu0
          %v2260 = vadd.f32 0.0, %v2259
          %v2261 = vpop.f32.mrb[0].mxu0
          %2262 = vmatprep.mubr.f32.mxu0 0.0
          %2263 = vmatmul.mubr.f32.gmra.mrb[0].mxu0 %v2133
          %v2264 = vpop.f32.mrb[0].mxu0
          %v2265 = vadd.f32 0.0, %v2264
          %v2266 = vpop.f32.mrb[0].mxu0
          %2267 = vmatprep.mubr.f32.mxu0 0.0
          %2268 = vmatmul.mubr.f32.gmra.mrb[0].mxu0 %v2136
          %v2269 = vpop.f32.mrb[0].mxu0
          %v2270 = vadd.f32 0.0, %v2269
          %v2271 = vpop.f32.mrb[0].mxu0
          %2272 = vmatprep.mubr.f32.mxu0 0.0
          %2273 = vmatmul.mubr.f32.gmra.mrb[0].mxu0 %v2139
          %v2274 = vpop.f32.mrb[0].mxu0
          %v2275 = vadd.f32 0.0, %v2274
          %v2276 = vpop.f32.mrb[0].mxu0
          %2277 = vmatprep.mubr.f32.mxu0 0.0
          %2278 = vmatmul.mubr.f32.gmra.mrb[0].mxu0 %v2142
          %v2279 = vpop.f32.mrb[0].mxu0
          %v2280 = vadd.f32 0.0, %v2279
          %v2281 = vpop.f32.mrb[0].mxu0
          %2282 = vmatprep.mubr.f32.mxu0 0.0
          %2283 = vmatmul.mubr.f32.gmra.mrb[0].mxu0 %v2145
          %v2284 = vpop.f32.mrb[0].mxu0
          %v2285 = vadd.f32 0.0, %v2284
          %v2286 = vpop.f32.mrb[0].mxu0
          %2287 = vmatprep.mubr.f32.mxu0 0.0
          %2288 = vmatmul.mubr.f32.gmra.mrb[0].mxu0 %v2148
          %v2289 = vpop.f32.mrb[0].mxu0
          %v2290 = vadd.f32 0.0, %v2289
          %v2291 = vpop.f32.mrb[0].mxu0
          %2292 = vmatprep.mubr.f32.mxu0 0.0
          %2293 = vmatmul.mubr.f32.gmra.mrb[0].mxu0 %v2151
          %v2294 = vpop.f32.mrb[0].mxu0
          %v2295 = vadd.f32 0.0, %v2294
          %v2296 = vpop.f32.mrb[0].mxu0
          %2297 = vdwg.mxu0
          %v2298 = vld [vmem:[%s7] sm:$0x1]
          %v2299 = vld [vmem:[%s8] sm:$0x1]
          %v2300 = vsel %vm485, %v2220, 0.0
          %2301 = vadd.xlane.f32.xlu0 %v2300
          %v2302 = vpop.xlane.xlu0 %2301
          %v2303 = vsel %vm485, %v2225, 0.0
          %2304 = vadd.xlane.f32.xlu0 %v2303
          %v2305 = vpop.xlane.xlu0 %2304
          %v2306 = vsel %vm485, %v2230, 0.0
          %2307 = vadd.xlane.f32.xlu0 %v2306
          %v2308 = vpop.xlane.xlu0 %2307
          %v2309 = vsel %vm485, %v2235, 0.0
          %2310 = vadd.xlane.f32.xlu0 %v2309
          %v2311 = vpop.xlane.xlu0 %2310
          %v2312 = vsel %vm485, %v2240, 0.0
          %2313 = vadd.xlane.f32.xlu0 %v2312
          %v2314 = vpop.xlane.xlu0 %2313
          %v2315 = vsel %vm485, %v2245, 0.0
          %2316 = vadd.xlane.f32.xlu0 %v2315
          %v2317 = vpop.xlane.xlu0 %2316
          %v2318 = vsel %vm485, %v2250, 0.0
          %2319 = vadd.xlane.f32.xlu0 %v2318
          %v2320 = vpop.xlane.xlu0 %2319
          %v2321 = vsel %vm485, %v2255, 0.0
          %2322 = vadd.xlane.f32.xlu0 %v2321
          %v2323 = vpop.xlane.xlu0 %2322
          %v2324 = vsel %vm485, %v2260, 0.0
          %2325 = vadd.xlane.f32.xlu0 %v2324
          %v2326 = vpop.xlane.xlu0 %2325
          %v2327 = vsel %vm485, %v2265, 0.0
          %2328 = vadd.xlane.f32.xlu0 %v2327
          %v2329 = vpop.xlane.xlu0 %2328
          %v2330 = vsel %vm485, %v2270, 0.0
          %2331 = vadd.xlane.f32.xlu0 %v2330
          %v2332 = vpop.xlane.xlu0 %2331
          %v2333 = vsel %vm485, %v2275, 0.0
          %2334 = vadd.xlane.f32.xlu0 %v2333
          %v2335 = vpop.xlane.xlu0 %2334
          %v2336 = vsel %vm485, %v2280, 0.0
          %2337 = vadd.xlane.f32.xlu0 %v2336
          %v2338 = vpop.xlane.xlu0 %2337
          %v2339 = vsel %vm485, %v2285, 0.0
          %2340 = vadd.xlane.f32.xlu0 %v2339
          %v2341 = vpop.xlane.xlu0 %2340
          %v2342 = vsel %vm485, %v2290, 0.0
          %2343 = vadd.xlane.f32.xlu0 %v2342
          %v2344 = vpop.xlane.xlu0 %2343
          %v2345 = vsel %vm485, %v2295, 0.0
          %2346 = vadd.xlane.f32.xlu0 %v2345
          %v2347 = vpop.xlane.xlu0 %2346
          %v2348 = vmul.f32 %v2302, %v1880
          %v2349 = vmul.f32 %v2305, %v1880
          %v2350 = vmul.f32 %v2308, %v1880
          %v2351 = vmul.f32 %v2311, %v1880
          %v2352 = vmul.f32 %v2314, %v1880
          %v2353 = vmul.f32 %v2317, %v1880
          %v2354 = vmul.f32 %v2320, %v1880
          %v2355 = vmul.f32 %v2323, %v1880
          %v2356 = vmul.f32 %v2326, %v1880
          %v2357 = vmul.f32 %v2329, %v1880
          %v2358 = vmul.f32 %v2332, %v1880
          %v2359 = vmul.f32 %v2335, %v1880
          %v2360 = vmul.f32 %v2338, %v1880
          %v2361 = vmul.f32 %v2341, %v1880
          %v2362 = vmul.f32 %v2344, %v1880
          %v2363 = vmul.f32 %v2347, %v1880
          %v2364 = vsub.f32 %v2220, %v2348
          %v2365 = vsub.f32 %v2225, %v2349
          %v2366 = vsub.f32 %v2230, %v2350
          %v2367 = vsub.f32 %v2235, %v2351
          %v2368 = vsub.f32 %v2240, %v2352
          %v2369 = vsub.f32 %v2245, %v2353
          %v2370 = vsub.f32 %v2250, %v2354
          %v2371 = vsub.f32 %v2255, %v2355
          %v2372 = vsub.f32 %v2260, %v2356
          %v2373 = vsub.f32 %v2265, %v2357
          %v2374 = vsub.f32 %v2270, %v2358
          %v2375 = vsub.f32 %v2275, %v2359
          %v2376 = vsub.f32 %v2280, %v2360
          %v2377 = vsub.f32 %v2285, %v2361
          %v2378 = vsub.f32 %v2290, %v2362
          %v2379 = vsub.f32 %v2295, %v2363
          %v2380 = vmul.f32 %v2364, %v2364
          %v2381 = vmul.f32 %v2365, %v2365
          %v2382 = vmul.f32 %v2366, %v2366
          %v2383 = vmul.f32 %v2367, %v2367
          %v2384 = vmul.f32 %v2368, %v2368
          %v2385 = vmul.f32 %v2369, %v2369
          %v2386 = vmul.f32 %v2370, %v2370
          %v2387 = vmul.f32 %v2371, %v2371
          %v2388 = vmul.f32 %v2372, %v2372
          %v2389 = vmul.f32 %v2373, %v2373
          %v2390 = vmul.f32 %v2374, %v2374
          %v2391 = vmul.f32 %v2375, %v2375
          %v2392 = vmul.f32 %v2376, %v2376
          %v2393 = vmul.f32 %v2377, %v2377
          %v2394 = vmul.f32 %v2378, %v2378
          %v2395 = vmul.f32 %v2379, %v2379
          %v2396 = vsel %vm485, %v2380, 0.0
          %2397 = vadd.xlane.f32.xlu0 %v2396
          %v2398 = vpop.xlane.xlu0 %2397
          %v2399 = vsel %vm485, %v2381, 0.0
          %2400 = vadd.xlane.f32.xlu0 %v2399
          %v2401 = vpop.xlane.xlu0 %2400
          %v2402 = vsel %vm485, %v2382, 0.0
          %2403 = vadd.xlane.f32.xlu0 %v2402
          %v2404 = vpop.xlane.xlu0 %2403
          %v2405 = vsel %vm485, %v2383, 0.0
          %2406 = vadd.xlane.f32.xlu0 %v2405
          %v2407 = vpop.xlane.xlu0 %2406
          %v2408 = vsel %vm485, %v2384, 0.0
          %2409 = vadd.xlane.f32.xlu0 %v2408
          %v2410 = vpop.xlane.xlu0 %2409
          %v2411 = vsel %vm485, %v2385, 0.0
          %2412 = vadd.xlane.f32.xlu0 %v2411
          %v2413 = vpop.xlane.xlu0 %2412
          %v2414 = vsel %vm485, %v2386, 0.0
          %2415 = vadd.xlane.f32.xlu0 %v2414
          %v2416 = vpop.xlane.xlu0 %2415
          %v2417 = vsel %vm485, %v2387, 0.0
          %2418 = vadd.xlane.f32.xlu0 %v2417
          %v2419 = vpop.xlane.xlu0 %2418
          %v2420 = vsel %vm485, %v2388, 0.0
          %2421 = vadd.xlane.f32.xlu0 %v2420
          %v2422 = vpop.xlane.xlu0 %2421
          %v2423 = vsel %vm485, %v2389, 0.0
          %2424 = vadd.xlane.f32.xlu0 %v2423
          %v2425 = vpop.xlane.xlu0 %2424
          %v2426 = vsel %vm485, %v2390, 0.0
          %2427 = vadd.xlane.f32.xlu0 %v2426
          %v2428 = vpop.xlane.xlu0 %2427
          %v2429 = vsel %vm485, %v2391, 0.0
          %2430 = vadd.xlane.f32.xlu0 %v2429
          %v2431 = vpop.xlane.xlu0 %2430
          %v2432 = vsel %vm485, %v2392, 0.0
          %2433 = vadd.xlane.f32.xlu0 %v2432
          %v2434 = vpop.xlane.xlu0 %2433
          %v2435 = vsel %vm485, %v2393, 0.0
          %2436 = vadd.xlane.f32.xlu0 %v2435
          %v2437 = vpop.xlane.xlu0 %2436
          %v2438 = vsel %vm485, %v2394, 0.0
          %2439 = vadd.xlane.f32.xlu0 %v2438
          %v2440 = vpop.xlane.xlu0 %2439
          %v2441 = vsel %vm485, %v2395, 0.0
          %2442 = vadd.xlane.f32.xlu0 %v2441
          %v2443 = vpop.xlane.xlu0 %2442
          %v2444 = vmul.f32 %v2398, %v1880
          %v2445 = vmul.f32 %v2401, %v1880
          %v2446 = vmul.f32 %v2404, %v1880
          %v2447 = vmul.f32 %v2407, %v1880
          %v2448 = vmul.f32 %v2410, %v1880
          %v2449 = vmul.f32 %v2413, %v1880
          %v2450 = vmul.f32 %v2416, %v1880
          %v2451 = vmul.f32 %v2419, %v1880
          %v2452 = vmul.f32 %v2422, %v1880
          %v2453 = vmul.f32 %v2425, %v1880
          %v2454 = vmul.f32 %v2428, %v1880
          %v2455 = vmul.f32 %v2431, %v1880
          %v2456 = vmul.f32 %v2434, %v1880
          %v2457 = vmul.f32 %v2437, %v1880
          %v2458 = vmul.f32 %v2440, %v1880
          %v2459 = vmul.f32 %v2443, %v1880
          %v2460 = vadd.f32 %v2444, 1e-05
          %v2461 = vadd.f32 %v2445, 1e-05
          %v2462 = vadd.f32 %v2446, 1e-05
          %v2463 = vadd.f32 %v2447, 1e-05
          %v2464 = vadd.f32 %v2448, 1e-05
          %v2465 = vadd.f32 %v2449, 1e-05
          %v2466 = vadd.f32 %v2450, 1e-05
          %v2467 = vadd.f32 %v2451, 1e-05
          %v2468 = vadd.f32 %v2452, 1e-05
          %v2469 = vadd.f32 %v2453, 1e-05
          %v2470 = vadd.f32 %v2454, 1e-05
          %v2471 = vadd.f32 %v2455, 1e-05
          %v2472 = vadd.f32 %v2456, 1e-05
          %v2473 = vadd.f32 %v2457, 1e-05
          %v2474 = vadd.f32 %v2458, 1e-05
          %v2475 = vadd.f32 %v2459, 1e-05
          %v2476 = vrsqrt.pop %v2460
          %v2477 = vrsqrt.pop %v2461
          %v2478 = vrsqrt.pop %v2462
          %v2479 = vrsqrt.pop %v2463
          %v2480 = vrsqrt.pop %v2464
          %v2481 = vrsqrt.pop %v2465
          %v2482 = vrsqrt.pop %v2466
          %v2483 = vrsqrt.pop %v2467
          %v2484 = vrsqrt.pop %v2468
          %v2485 = vrsqrt.pop %v2469
          %v2486 = vrsqrt.pop %v2470
          %v2487 = vrsqrt.pop %v2471
          %v2488 = vrsqrt.pop %v2472
          %v2489 = vrsqrt.pop %v2473
          %v2490 = vrsqrt.pop %v2474
          %v2491 = vrsqrt.pop %v2475
          %v2492 = vmul.f32 %v2364, %v2476
          %v2493 = vmul.f32 %v2365, %v2477
          %v2494 = vmul.f32 %v2366, %v2478
          %v2495 = vmul.f32 %v2367, %v2479
          %v2496 = vmul.f32 %v2368, %v2480
          %v2497 = vmul.f32 %v2369, %v2481
          %v2498 = vmul.f32 %v2370, %v2482
          %v2499 = vmul.f32 %v2371, %v2483
          %v2500 = vmul.f32 %v2372, %v2484
          %v2501 = vmul.f32 %v2373, %v2485
          %v2502 = vmul.f32 %v2374, %v2486
          %v2503 = vmul.f32 %v2375, %v2487
          %v2504 = vmul.f32 %v2376, %v2488
          %v2505 = vmul.f32 %v2377, %v2489
          %v2506 = vmul.f32 %v2378, %v2490
          %v2507 = vmul.f32 %v2379, %v2491
          %v2509 = vlaneseq
          %v2510 = vshrl.u32 %v2509, 7
          %v2511 = vsub.s32 0, %v2510
          %v2512 = vrot.slane %v2298, %v2511
          %v2514 = vmul.f32 %v2492, %v2512
          %v2515 = vmul.f32 %v2493, %v2512
          %v2516 = vmul.f32 %v2494, %v2512
          %v2517 = vmul.f32 %v2495, %v2512
          %v2518 = vmul.f32 %v2496, %v2512
          %v2519 = vmul.f32 %v2497, %v2512
          %v2520 = vmul.f32 %v2498, %v2512
          %v2521 = vmul.f32 %v2499, %v2512
          %v2522 = vmul.f32 %v2500, %v2512
          %v2523 = vmul.f32 %v2501, %v2512
          %v2524 = vmul.f32 %v2502, %v2512
          %v2525 = vmul.f32 %v2503, %v2512
          %v2526 = vmul.f32 %v2504, %v2512
          %v2527 = vmul.f32 %v2505, %v2512
          %v2528 = vmul.f32 %v2506, %v2512
          %v2529 = vmul.f32 %v2507, %v2512
          %v2531 = vlaneseq
          %v2532 = vshrl.u32 %v2531, 7
          %v2533 = vsub.s32 0, %v2532
          %v2534 = vrot.slane %v2299, %v2533
          %v2536 = vadd.f32 %v2514, %v2534
          %v2537 = vadd.f32 %v2515, %v2534
          %v2538 = vadd.f32 %v2516, %v2534
          %v2539 = vadd.f32 %v2517, %v2534
          %v2540 = vadd.f32 %v2518, %v2534
          %v2541 = vadd.f32 %v2519, %v2534
          %v2542 = vadd.f32 %v2520, %v2534
          %v2543 = vadd.f32 %v2521, %v2534
          %v2544 = vadd.f32 %v2522, %v2534
          %v2545 = vadd.f32 %v2523, %v2534
          %v2546 = vadd.f32 %v2524, %v2534
          %v2547 = vadd.f32 %v2525, %v2534
          %v2548 = vadd.f32 %v2526, %v2534
          %v2549 = vadd.f32 %v2527, %v2534
          %v2550 = vadd.f32 %v2528, %v2534
          %v2551 = vadd.f32 %v2529, %v2534
          %v2552 = vld [vmem:[%s425] sm:$0xff]
          %v2553 = vld [vmem:[%s425 + $0x8] sm:$0xff]
          %v2554 = vld [vmem:[%s425 + $0x10] sm:$0xff]
          %v2555 = vld [vmem:[%s425 + $0x18] sm:$0xff]
          %v2556 = vld [vmem:[%s425 + $0x20] sm:$0xff]
          %v2557 = vld [vmem:[%s425 + $0x28] sm:$0xff]
          %v2558 = vld [vmem:[%s425 + $0x30] sm:$0xff]
          %v2559 = vld [vmem:[%s425 + $0x38] sm:$0xff]
          %v2560 = vld [vmem:[%s425 + $0x40] sm:$0xff]
          %v2561 = vld [vmem:[%s425 + $0x48] sm:$0xff]
          %v2562 = vld [vmem:[%s425 + $0x50] sm:$0xff]
          %v2563 = vld [vmem:[%s425 + $0x58] sm:$0xff]
          %v2564 = vld [vmem:[%s425 + $0x60] sm:$0xff]
          %v2565 = vld [vmem:[%s425 + $0x68] sm:$0xff]
          %v2566 = vld [vmem:[%s425 + $0x70] sm:$0xff]
          %v2567 = vld [vmem:[%s425 + $0x78] sm:$0xff]
          %v2568 = vadd.f32 %v2536, %v2552
          %v2569 = vadd.f32 %v2537, %v2553
          %v2570 = vadd.f32 %v2538, %v2554
          %v2571 = vadd.f32 %v2539, %v2555
          %v2572 = vadd.f32 %v2540, %v2556
          %v2573 = vadd.f32 %v2541, %v2557
          %v2574 = vadd.f32 %v2542, %v2558
          %v2575 = vadd.f32 %v2543, %v2559
          %v2576 = vadd.f32 %v2544, %v2560
          %v2577 = vadd.f32 %v2545, %v2561
          %v2578 = vadd.f32 %v2546, %v2562
          %v2579 = vadd.f32 %v2547, %v2563
          %v2580 = vadd.f32 %v2548, %v2564
          %v2581 = vadd.f32 %v2549, %v2565
          %v2582 = vadd.f32 %v2550, %v2566
          %v2583 = vadd.f32 %v2551, %v2567
          %v2584 = vmax.f32 %v2568, 0.0
          %v2585 = vmax.f32 %v2569, 0.0
          %v2586 = vmax.f32 %v2570, 0.0
          %v2587 = vmax.f32 %v2571, 0.0
          %v2588 = vmax.f32 %v2572, 0.0
          %v2589 = vmax.f32 %v2573, 0.0
          %v2590 = vmax.f32 %v2574, 0.0
          %v2591 = vmax.f32 %v2575, 0.0
          %v2592 = vmax.f32 %v2576, 0.0
          %v2593 = vmax.f32 %v2577, 0.0
          %v2594 = vmax.f32 %v2578, 0.0
          %v2595 = vmax.f32 %v2579, 0.0
          %v2596 = vmax.f32 %v2580, 0.0
          %v2597 = vmax.f32 %v2581, 0.0
          %v2598 = vmax.f32 %v2582, 0.0
          %v2599 = vmax.f32 %v2583, 0.0
          %2600 = vst.msk [vmem:[%s438] sm:$0xff] %vm485, %v2584
          %2601 = vst.msk [vmem:[%s438 + $0x8] sm:$0xff] %vm485, %v2585
          %2602 = vst.msk [vmem:[%s438 + $0x10] sm:$0xff] %vm485, %v2586
          %2603 = vst.msk [vmem:[%s438 + $0x18] sm:$0xff] %vm485, %v2587
          %2604 = vst.msk [vmem:[%s438 + $0x20] sm:$0xff] %vm485, %v2588
          %2605 = vst.msk [vmem:[%s438 + $0x28] sm:$0xff] %vm485, %v2589
          %2606 = vst.msk [vmem:[%s438 + $0x30] sm:$0xff] %vm485, %v2590
          %2607 = vst.msk [vmem:[%s438 + $0x38] sm:$0xff] %vm485, %v2591
          %2608 = vst.msk [vmem:[%s438 + $0x40] sm:$0xff] %vm485, %v2592
          %2609 = vst.msk [vmem:[%s438 + $0x48] sm:$0xff] %vm485, %v2593
          %2610 = vst.msk [vmem:[%s438 + $0x50] sm:$0xff] %vm485, %v2594
          %2611 = vst.msk [vmem:[%s438 + $0x58] sm:$0xff] %vm485, %v2595
          %2612 = vst.msk [vmem:[%s438 + $0x60] sm:$0xff] %vm485, %v2596
          %2613 = vst.msk [vmem:[%s438 + $0x68] sm:$0xff] %vm485, %v2597
          %2614 = vst.msk [vmem:[%s438 + $0x70] sm:$0xff] %vm485, %v2598
          %2615 = vst.msk [vmem:[%s438 + $0x78] sm:$0xff] %vm485, %v2599
        $region72: #{tpu_custom_call.1} parent=55 // pred_fallthru
          _
        %s2616 = smul.u32 16, %s27
        %p2617 = scmp.lt.s32.totalorder %s2616, 31
        %s2618 = scalar_select %p2617, %s2616, 31
        %s2619 = smul.addr %s2618, 8
        %s2620 = scalar_lea.vmem %s9, %s2619
        // Predicated region
        $region73: #{tpu_custom_call.1} parent=55 // pred_check
          %p2621 = pneg %p259
        $region74: #{tpu_custom_call.1} parent=55 // pred_check_branch
          %2623 = sbr.rel (%p2621) target = $region76
        $region75: #{tpu_custom_call.1} parent=55 // pred_region
          %s2624 = smul.u32 16, %s27
        $region76: #{tpu_custom_call.1} parent=55 // pred_fallthru
          _
      $region56: #{tpu_custom_call.1} parent=5 // pred_fallthru
        _
      %p2625 = scmp.le.s32.totalorder 2, %s18
      // Predicated region
      $region77: #{tpu_custom_call.1} parent=5 // pred_check
        %p2626 = pneg %p2625
      $region78: #{tpu_custom_call.1} parent=5 // pred_check_branch
        %2628 = sbr.rel (%p2626) target = $region80
      $region79: #{tpu_custom_call.1} parent=5 // pred_region
        %s2629 = ssub.s32 %s18, 2
        // Predicated region
        $region81: #{tpu_custom_call.1} parent=79 // pred_check
          %p2630 = pneg %p265
        $region82: #{tpu_custom_call.1} parent=79 // pred_check_branch
          %2632 = sbr.rel (%p2630) target = $region84
        $region83: #{tpu_custom_call.1} parent=79 // pred_region
          %s2633 = smul.u32 16, %s29
          %p2634 = scmp.lt.s32.totalorder %s2633, 31
          %s2635 = scalar_select %p2634, %s2633, 31
          %s2636 = smul.addr %s2635, 8
          %s2637 = scalar_lea.vmem %s9, %s2636
        $region84: #{tpu_custom_call.1} parent=79 // pred_fallthru
          _
      $region80: #{tpu_custom_call.1} parent=5 // pred_fallthru
        _
    $region6: #{tpu_custom_call.1} parent=1 // loop_footer
      %s22 = sadd.s32 1, %s18
    $region7: #{tpu_custom_call.1} parent=1 // loop_footer_branch
      %17 = sbr.rel target = $region3
    $region8: #{tpu_custom_call.1} parent=1 // loop_exit
      _
    %2638 = vsyncpa [#allocation4], 1
    %s2639 = scalar_lea.sflag [#allocation4], 1
    %2640 = vsyncpa %s2639, 1

</llo_original>
